<compile_context>
chip_gen: v5e
topology: v5e:2x2
jax: 0.10.0
libtpu: 0.0.40
codegen_flags: <defaults>
</compile_context>

<pallas_src>
import functools
import math

import jax
import jax.numpy as jnp
import numpy as np
from jax.experimental import pallas as pl
from jax.experimental.pallas import tpu as pltpu


# ----------------------------------------------------------------------------
# Config (synthetic trunk/neck; channel dims chosen lane-dense = multiples of 128)
# ----------------------------------------------------------------------------
IN_CHANS = 3
CHANNEL_LIST = (128, 256, 256)   # trunk.channel_list == neck.backbone_channel_list
D_MODEL = 128
PATCH_K = 2                      # stride-k, k x k, non-overlapping patch convs
SCALP = 0
VMEM_LIMIT_BYTES = 32 * 1024 * 1024   # explicit budget, safe on v5e/v6e/v7x
ROW_BLOCK_TARGET = 512                # target matmul M rows per grid step


# ----------------------------------------------------------------------------
# Fused Pallas kernel: one trunk stage (im2col patch conv + bias + GELU) + the
# neck lateral 1x1 conv, as two back-to-back 2D matmuls per row block.
# ----------------------------------------------------------------------------
def _fused_stage_kernel(x_ref, wt_ref, bt_ref, wn_ref, bn_ref, h_ref, y_ref):
    """Shapes seen by the kernel:

      x_ref  : (TM, K)   bf16  im2col'd input pixels (K = k*k*Cin)
      wt_ref : (K, Ct)   bf16  trunk conv weight (resident across the grid)
      bt_ref : (1, Ct)   f32   trunk bias
      wn_ref : (Ct, D)   bf16  neck lateral 1x1 weight (resident)
      bn_ref : (1, D)    f32   neck lateral bias
      h_ref  : (TM, Ct)  bf16  trunk activation (feeds the next stage)
      y_ref  : (TM, D)   f32   neck lateral feature
    """
    # bf16 operands into the MXU, f32 accumulation (stays in vregs).
    acc = jnp.dot(x_ref[...], wt_ref[...], preferred_element_type=jnp.float32)
    # bias + GELU in f32 (no bf16 VPU/EUP on v5e); tanh GELU uses the EUP.
    # TODO(synk): PyTorch nn.GELU defaults to exact erf; tanh approximation used here.
    h = jax.nn.gelu(acc + bt_ref[...], approximate=True)
    h_bf = h.astype(jnp.bfloat16)
    h_ref[...] = h_bf
    y = jnp.dot(h_bf, wn_ref[...], preferred_element_type=jnp.float32) + bn_ref[...]
    y_ref[...] = y.astype(y_ref.dtype)


def _choose_row_block(m_rows, target=ROW_BLOCK_TARGET):
    """Largest divisor of m_rows that is <= target, is a multiple of 8 (or the
    full extent), and leaves >= 2 grid blocks where possible (v7x megacore)."""
    divisors = [d for d in range(1, m_rows + 1) if m_rows % d == 0]
    ok = [d for d in divisors if d % 8 == 0 or d == m_rows]
    best = None
    for d in sorted(ok):
        if d <= target and m_rows // d >= 2:
            best = d
    if best is None:
        cands = [d for d in ok if d <= target]
        best = max(cands) if cands else m_rows
    return best


def fused_stage(xcol, wt, bt, wn, bn):
    """One trunk level + its neck lateral conv on im2col'd pixels.

    xcol: [M, K] bf16 (M = B*Ho*Wo output pixels, K = k*k*Cin)
    wt:   [K, Ct] bf16, bt: [1, Ct] f32
    wn:   [Ct, D_MODEL] bf16, bn: [1, D_MODEL] f32
    Returns (h [M, Ct] bf16, y [M, D_MODEL] f32).
    """
    M, K = xcol.shape
    Ct = wt.shape[1]
    D = wn.shape[1]
    tm = _choose_row_block(M)
    grid = (M // tm,)

    flops = 2 * M * K * Ct + 2 * M * Ct * D
    bytes_accessed = (M * K * 2 + K * Ct * 2 + Ct * 4 + Ct * D * 2 + D * 4
                      + M * Ct * 2 + M * D * 4)

    h, y = pl.pallas_call(
        _fused_stage_kernel,
        out_shape=(
            jax.ShapeDtypeStruct((M, Ct), jnp.bfloat16),
            jax.ShapeDtypeStruct((M, D), jnp.float32),
        ),
        grid_spec=pltpu.PrefetchScalarGridSpec(
            num_scalar_prefetch=0,
            grid=grid,                                   # single parallel row-block axis
            in_specs=[
                pl.BlockSpec((tm, K), lambda m: (m, 0)),
                pl.BlockSpec((K, Ct), lambda m: (0, 0)),  # resident weight
                pl.BlockSpec((1, Ct), lambda m: (0, 0)),
                pl.BlockSpec((Ct, D), lambda m: (0, 0)),  # resident weight
                pl.BlockSpec((1, D), lambda m: (0, 0)),
            ],
            out_specs=[
                pl.BlockSpec((tm, Ct), lambda m: (m, 0)),
                pl.BlockSpec((tm, D), lambda m: (m, 0)),
            ],
        ),
        compiler_params=pltpu.CompilerParams(
            dimension_semantics=("parallel",),
            vmem_limit_bytes=VMEM_LIMIT_BYTES,
        ),
        cost_estimate=pl.CostEstimate(
            flops=flops, transcendentals=M * Ct, bytes_accessed=bytes_accessed),
    )(xcol, wt, bt, wn, bn)
    return h, y


# ----------------------------------------------------------------------------
# Host-side im2col for non-overlapping stride-k k x k patches (one XLA pass;
# for level 1 it fuses with the NCHW->NHWC boundary transpose + bf16 cast).
# ----------------------------------------------------------------------------
def _im2col(x_nhwc, k):
    B, H, W, C = x_nhwc.shape
    assert H % k == 0 and W % k == 0, (H, W, k)
    Ho, Wo = H // k, W // k
    xc = x_nhwc.reshape(B, Ho, k, Wo, k, C).transpose(0, 1, 3, 2, 4, 5)
    return xc.reshape(B * Ho * Wo, k * k * C), (B, Ho, Wo)


# ----------------------------------------------------------------------------
# Sine positional encoding: parameter-free, input-independent -> computed once
# on the host (numpy) per shape and embedded as a constant under jit.
# Matches PositionEmbeddingSine(normalize=True); returns NCHW.
# ----------------------------------------------------------------------------
@functools.lru_cache(maxsize=None)
def position_embedding_sine(B, H, W, num_pos_feats, temperature=10000.0):
    scale = 2.0 * math.pi
    eps = 1e-6
    y_embed = np.tile(np.arange(1, H + 1, dtype=np.float32).reshape(1, H, 1), (B, 1, W))
    x_embed = np.tile(np.arange(1, W + 1, dtype=np.float32).reshape(1, 1, W), (B, H, 1))
    y_embed = y_embed / (y_embed[:, -1:, :] + eps) * scale
    x_embed = x_embed / (x_embed[:, :, -1:] + eps) * scale

    dim_t = np.arange(num_pos_feats, dtype=np.float32)
    dim_t = temperature ** (2.0 * np.floor(dim_t / 2.0) / num_pos_feats)

    pos_x = x_embed[:, :, :, None] / dim_t
    pos_y = y_embed[:, :, :, None] / dim_t
    pos_x = np.stack(
        [np.sin(pos_x[:, :, :, 0::2]), np.cos(pos_x[:, :, :, 1::2])], axis=4
    ).reshape(B, H, W, -1)
    pos_y = np.stack(
        [np.sin(pos_y[:, :, :, 0::2]), np.cos(pos_y[:, :, :, 1::2])], axis=4
    ).reshape(B, H, W, -1)
    pos = np.concatenate([pos_y, pos_x], axis=3).transpose(0, 3, 1, 2)  # NCHW
    return np.ascontiguousarray(pos, dtype=np.float32)


# ----------------------------------------------------------------------------
# Parameters (deterministic synthetic init; bf16 weights, f32 biases)
# ----------------------------------------------------------------------------
def init_params(key):
    # NOTE: PyTorch Conv2d weights are [Cout, Cin, kh, kw]; here the trunk weight
    # is stored as [k*k*Cin, Cout] with rows ordered (kh, kw, Cin), matching the
    # im2col column order.
    trunk, neck = [], []
    cin = IN_CHANS
    for cout in CHANNEL_LIST:
        key, k1 = jax.random.split(key)
        w = 0.02 * jax.random.normal(k1, (PATCH_K * PATCH_K * cin, cout), jnp.float32)
        trunk.append((w.astype(jnp.bfloat16), jnp.zeros((1, cout), jnp.float32)))
        cin = cout
    for c in CHANNEL_LIST:
        key, k1 = jax.random.split(key)
        w = 0.02 * jax.random.normal(k1, (c, D_MODEL), jnp.float32)
        neck.append((w.astype(jnp.bfloat16), jnp.zeros((1, D_MODEL), jnp.float32)))
    return {"trunk": trunk, "neck": neck}


# ----------------------------------------------------------------------------
# ImageEncoder forward (mirrors the PyTorch wrapper semantics), jitted.
# ----------------------------------------------------------------------------
@functools.partial(jax.jit, static_argnames=("scalp",))
def image_encoder_forward(params, sample_nchw, scalp=SCALP):
    trunk_channel_list = list(CHANNEL_LIST)
    neck_backbone_channel_list = list(CHANNEL_LIST)
    assert trunk_channel_list == neck_backbone_channel_list, (
        f"Channel dims of trunk and neck do not match. "
        f"Trunk: {trunk_channel_list}, neck: {neck_backbone_channel_list}"
    )

    # Single boundary transpose NCHW -> NHWC, fused with the bf16 cast.
    x = jnp.transpose(sample_nchw, (0, 2, 3, 1)).astype(jnp.bfloat16)

    # trunk_out = trunk(sample); features, pos = neck(trunk_out)
    # (trunk stage and its lateral 1x1 conv are fused into one kernel per level).
    # TODO(synk): FPN top-down interpolate-and-add path omitted (neck configured
    # with no top-down levels in this minimal synthetic neck).
    features, pos = [], []
    for (wt, bt), (wn, bn) in zip(params["trunk"], params["neck"]):
        xcol, (B, Ho, Wo) = _im2col(x, PATCH_K)
        h2d, y2d = fused_stage(xcol, wt, bt, wn, bn)
        x = h2d.reshape(B, Ho, Wo, -1)                    # bf16 trunk act -> next level
        y = y2d.reshape(B, Ho, Wo, -1)                    # f32 neck lateral feature
        features.append(jnp.transpose(y, (0, 3, 1, 2)))   # NHWC -> NCHW at module boundary
        pos.append(jnp.asarray(position_embedding_sine(B, Ho, Wo, D_MODEL // 2)))

    if scalp > 0:
        features, pos = features[:-scalp], pos[:-scalp]
    src = features[-1]
    return {
        "vision_features": src,
        "vision_pos_enc": pos,
        "backbone_fpn": features,
    }


# ----------------------------------------------------------------------------
# Pure-JAX reference of the synthetic trunk+neck (same bf16 casts) for a
# numerical cross-check of the Pallas path.
# ----------------------------------------------------------------------------
def _reference_features(params, sample_nchw):
    x = jnp.transpose(sample_nchw, (0, 2, 3, 1)).astype(jnp.bfloat16)
    feats = []
    for (wt, bt), (wn, bn) in zip(params["trunk"], params["neck"]):
        xcol, (B, Ho, Wo) = _im2col(x, PATCH_K)
        h = jax.nn.gelu(
            jnp.dot(xcol, wt, preferred_element_type=jnp.float32) + bt,
            approximate=True,
        ).astype(jnp.bfloat16)
        y = jnp.dot(h, wn, preferred_element_type=jnp.float32) + bn
        x = h.reshape(B, Ho, Wo, -1)
        feats.append(jnp.transpose(y.reshape(B, Ho, Wo, -1), (0, 3, 1, 2)))
    return feats


# ----------------------------------------------------------------------------
if __name__ == "__main__":
    key = jax.random.PRNGKey(0)
    pkey, xkey = jax.random.split(key)
    params = init_params(pkey)

    # Small input consistent with the module: NCHW image batch.
    sample = jax.random.normal(xkey, (2, IN_CHANS, 16, 16), jnp.float32)

    out = image_encoder_forward(params, sample)
    out = jax.tree_util.tree_map(jax.block_until_ready, out)

    # Shape / semantics checks (3 levels: 8x8, 4x4, 2x2).
    n_levels = len(CHANNEL_LIST) - SCALP
    assert out["vision_features"].shape == (2, D_MODEL, 2, 2)
    assert len(out["backbone_fpn"]) == n_levels
    assert len(out["vision_pos_enc"]) == n_levels
    assert out["backbone_fpn"][0].shape == (2, D_MODEL, 8, 8)
    assert out["backbone_fpn"][1].shape == (2, D_MODEL, 4, 4)
    assert out["vision_pos_enc"][0].shape == (2, D_MODEL, 8, 8)
    assert bool(jnp.all(jnp.isfinite(out["vision_features"])))

    # Numerical cross-check against a pure-JAX reference of the same synthetic
    # trunk+neck (identical bf16 casts; tolerance covers MXU accumulation order).
    ref_feats = _reference_features(params, sample)
    for got, ref in zip(out["backbone_fpn"], ref_feats):
        np.testing.assert_allclose(np.asarray(got), np.asarray(ref),
                                   rtol=2e-2, atol=2e-2)

    print("KERNEL_OK")
</pallas_src>

<mosaic_0001>
module attributes {stable_mosaic.version = 11 : i64} {
  func.func @_fused_stage_kernel(%arg0: i32, %arg1: memref<16x512xbf16, #tpu.memory_space<vmem>>, %arg2: memref<512x256xbf16, #tpu.memory_space<vmem>>, %arg3: memref<1x256xf32, #tpu.memory_space<vmem>>, %arg4: memref<256x128xbf16, #tpu.memory_space<vmem>>, %arg5: memref<1x128xf32, #tpu.memory_space<vmem>>, %arg6: memref<16x256xbf16, #tpu.memory_space<vmem>>, %arg7: memref<16x128xf32, #tpu.memory_space<vmem>>) attributes {dimension_semantics = [#tpu.dimension_semantics<parallel>], iteration_bounds = array<i64: 2>, scalar_prefetch = 0 : i64, scratch_operands = 0 : i64, tpu.core_type = #tpu.core_type<tc>, window_params = [{transform_indices = @transform_0, window_bounds = array<i64: 16, 512>}, {pipeline_mode = #tpu.pipeline_mode<synchronous>, transform_indices = @transform_1, window_bounds = array<i64: 512, 256>}, {pipeline_mode = #tpu.pipeline_mode<synchronous>, transform_indices = @transform_2, window_bounds = array<i64: 1, 256>}, {pipeline_mode = #tpu.pipeline_mode<synchronous>, transform_indices = @transform_3, window_bounds = array<i64: 256, 128>}, {pipeline_mode = #tpu.pipeline_mode<synchronous>, transform_indices = @transform_4, window_bounds = array<i64: 1, 128>}, {transform_indices = @transform_5, window_bounds = array<i64: 16, 256>}, {transform_indices = @transform_6, window_bounds = array<i64: 16, 128>}]} {
    %c0 = arith.constant 0 : index
    %c0_0 = arith.constant 0 : index
    %0 = vector.load %arg1[%c0, %c0_0] : memref<16x512xbf16, #tpu.memory_space<vmem>>, vector<16x512xbf16>
    %c0_1 = arith.constant 0 : index
    %c0_2 = arith.constant 0 : index
    %1 = vector.load %arg2[%c0_1, %c0_2] : memref<512x256xbf16, #tpu.memory_space<vmem>>, vector<512x256xbf16>
    %cst = arith.constant dense<0.000000e+00> : vector<16x256xf32>
    %2 = tpu.matmul %0, %1, %cst {dimension_numbers = #tpu.dot_dimension_numbers<[1], [0], [0], [1], [0, 0, 1, 1], [], []>} : vector<16x512xbf16>, vector<512x256xbf16>, vector<16x256xf32> -> vector<16x256xf32>
    %c0_3 = arith.constant 0 : index
    %c0_4 = arith.constant 0 : index
    %3 = vector.load %arg3[%c0_3, %c0_4] : memref<1x256xf32, #tpu.memory_space<vmem>>, vector<1x256xf32>
    %4 = vector.broadcast %3 : vector<1x256xf32> to vector<16x256xf32>
    %5 = arith.addf %2, %4 : vector<16x256xf32>
    %6 = arith.mulf %5, %5 : vector<16x256xf32>
    %7 = arith.mulf %5, %6 : vector<16x256xf32>
    %cst_5 = arith.constant 4.471500e-02 : f32
    %8 = vector.broadcast %cst_5 : f32 to vector<16x256xf32>
    %9 = arith.mulf %8, %7 : vector<16x256xf32>
    %10 = arith.addf %5, %9 : vector<16x256xf32>
    %cst_6 = arith.constant 0.797884583 : f32
    %11 = vector.broadcast %cst_6 : f32 to vector<16x256xf32>
    %12 = arith.mulf %11, %10 : vector<16x256xf32>
    %13 = math.tanh %12 : vector<16x256xf32>
    %cst_7 = arith.constant 1.000000e+00 : f32
    %14 = vector.broadcast %cst_7 : f32 to vector<16x256xf32>
    %15 = arith.addf %14, %13 : vector<16x256xf32>
    %cst_8 = arith.constant 5.000000e-01 : f32
    %16 = vector.broadcast %cst_8 : f32 to vector<16x256xf32>
    %17 = arith.mulf %16, %15 : vector<16x256xf32>
    %18 = arith.mulf %5, %17 : vector<16x256xf32>
    %19 = arith.truncf %18 : vector<16x256xf32> to vector<16x256xbf16>
    %c0_9 = arith.constant 0 : index
    %c0_10 = arith.constant 0 : index
    %20 = vector.load %arg6[%c0_9, %c0_10] : memref<16x256xbf16, #tpu.memory_space<vmem>>, vector<16x256xbf16>
    tpu.vector_store %arg6[%c0_9, %c0_10], %19 {strides = array<i32>} : memref<16x256xbf16, #tpu.memory_space<vmem>>, vector<16x256xbf16>,
    %c0_11 = arith.constant 0 : index
    %c0_12 = arith.constant 0 : index
    %21 = vector.load %arg4[%c0_11, %c0_12] : memref<256x128xbf16, #tpu.memory_space<vmem>>, vector<256x128xbf16>
    %cst_13 = arith.constant dense<0.000000e+00> : vector<16x128xf32>
    %22 = tpu.matmul %19, %21, %cst_13 {dimension_numbers = #tpu.dot_dimension_numbers<[1], [0], [0], [1], [0, 0, 1, 1], [], []>} : vector<16x256xbf16>, vector<256x128xbf16>, vector<16x128xf32> -> vector<16x128xf32>
    %c0_14 = arith.constant 0 : index
    %c0_15 = arith.constant 0 : index
    %23 = vector.load %arg5[%c0_14, %c0_15] : memref<1x128xf32, #tpu.memory_space<vmem>>, vector<1x128xf32>
    %24 = vector.broadcast %23 : vector<1x128xf32> to vector<16x128xf32>
    %25 = arith.addf %22, %24 : vector<16x128xf32>
    %c0_16 = arith.constant 0 : index
    %c0_17 = arith.constant 0 : index
    %26 = vector.load %arg7[%c0_16, %c0_17] : memref<16x128xf32, #tpu.memory_space<vmem>>, vector<16x128xf32>
    tpu.vector_store %arg7[%c0_16, %c0_17], %25 {strides = array<i32>} : memref<16x128xf32, #tpu.memory_space<vmem>>, vector<16x128xf32>,
    return
  }
  func.func @transform_0(%arg0: i32) -> (i32, i32) {
    %c0_i32 = arith.constant 0 : i32
    %c0_i32_0 = arith.constant 0 : i32
    return %arg0, %c0_i32 : i32, i32
  }
  func.func @transform_1(%arg0: i32) -> (i32, i32) {
    %c0_i32 = arith.constant 0 : i32
    %c0_i32_0 = arith.constant 0 : i32
    %c0_i32_1 = arith.constant 0 : i32
    return %c0_i32, %c0_i32_0 : i32, i32
  }
  func.func @transform_2(%arg0: i32) -> (i32, i32) {
    %c0_i32 = arith.constant 0 : i32
    %c0_i32_0 = arith.constant 0 : i32
    %c0_i32_1 = arith.constant 0 : i32
    return %c0_i32, %c0_i32_0 : i32, i32
  }
  func.func @transform_3(%arg0: i32) -> (i32, i32) {
    %c0_i32 = arith.constant 0 : i32
    %c0_i32_0 = arith.constant 0 : i32
    %c0_i32_1 = arith.constant 0 : i32
    return %c0_i32, %c0_i32_0 : i32, i32
  }
  func.func @transform_4(%arg0: i32) -> (i32, i32) {
    %c0_i32 = arith.constant 0 : i32
    %c0_i32_0 = arith.constant 0 : i32
    %c0_i32_1 = arith.constant 0 : i32
    return %c0_i32, %c0_i32_0 : i32, i32
  }
  func.func @transform_5(%arg0: i32) -> (i32, i32) {
    %c0_i32 = arith.constant 0 : i32
    %c0_i32_0 = arith.constant 0 : i32
    return %arg0, %c0_i32 : i32, i32
  }
  func.func @transform_6(%arg0: i32) -> (i32, i32) {
    %c0_i32 = arith.constant 0 : i32
    %c0_i32_0 = arith.constant 0 : i32
    return %arg0, %c0_i32 : i32, i32
  }
}

module attributes {stable_mosaic.version = 11 : i64} {
  func.func @_fused_stage_kernel(%arg0: i32, %arg1: memref<64x12xbf16, #tpu.memory_space<vmem>>, %arg2: memref<12x128xbf16, #tpu.memory_space<vmem>>, %arg3: memref<1x128xf32, #tpu.memory_space<vmem>>, %arg4: memref<128x128xbf16, #tpu.memory_space<vmem>>, %arg5: memref<1x128xf32, #tpu.memory_space<vmem>>, %arg6: memref<64x128xbf16, #tpu.memory_space<vmem>>, %arg7: memref<64x128xf32, #tpu.memory_space<vmem>>) attributes {dimension_semantics = [#tpu.dimension_semantics<parallel>], iteration_bounds = array<i64: 2>, scalar_prefetch = 0 : i64, scratch_operands = 0 : i64, tpu.core_type = #tpu.core_type<tc>, window_params = [{transform_indices = @transform_0, window_bounds = array<i64: 64, 12>}, {pipeline_mode = #tpu.pipeline_mode<synchronous>, transform_indices = @transform_1, window_bounds = array<i64: 12, 128>}, {pipeline_mode = #tpu.pipeline_mode<synchronous>, transform_indices = @transform_2, window_bounds = array<i64: 1, 128>}, {pipeline_mode = #tpu.pipeline_mode<synchronous>, transform_indices = @transform_3, window_bounds = array<i64: 128, 128>}, {pipeline_mode = #tpu.pipeline_mode<synchronous>, transform_indices = @transform_4, window_bounds = array<i64: 1, 128>}, {transform_indices = @transform_5, window_bounds = array<i64: 64, 128>}, {transform_indices = @transform_6, window_bounds = array<i64: 64, 128>}]} {
    %c0 = arith.constant 0 : index
    %c0_0 = arith.constant 0 : index
    %0 = vector.load %arg1[%c0, %c0_0] : memref<64x12xbf16, #tpu.memory_space<vmem>>, vector<64x12xbf16>
    %c0_1 = arith.constant 0 : index
    %c0_2 = arith.constant 0 : index
    %1 = vector.load %arg2[%c0_1, %c0_2] : memref<12x128xbf16, #tpu.memory_space<vmem>>, vector<12x128xbf16>
    %cst = arith.constant dense<0.000000e+00> : vector<64x128xf32>
    %2 = tpu.matmul %0, %1, %cst {dimension_numbers = #tpu.dot_dimension_numbers<[1], [0], [0], [1], [0, 0, 1, 1], [], []>} : vector<64x12xbf16>, vector<12x128xbf16>, vector<64x128xf32> -> vector<64x128xf32>
    %c0_3 = arith.constant 0 : index
    %c0_4 = arith.constant 0 : index
    %3 = vector.load %arg3[%c0_3, %c0_4] : memref<1x128xf32, #tpu.memory_space<vmem>>, vector<1x128xf32>
    %4 = vector.broadcast %3 : vector<1x128xf32> to vector<64x128xf32>
    %5 = arith.addf %2, %4 : vector<64x128xf32>
    %6 = arith.mulf %5, %5 : vector<64x128xf32>
    %7 = arith.mulf %5, %6 : vector<64x128xf32>
    %cst_5 = arith.constant 4.471500e-02 : f32
    %8 = vector.broadcast %cst_5 : f32 to vector<64x128xf32>
    %9 = arith.mulf %8, %7 : vector<64x128xf32>
    %10 = arith.addf %5, %9 : vector<64x128xf32>
    %cst_6 = arith.constant 0.797884583 : f32
    %11 = vector.broadcast %cst_6 : f32 to vector<64x128xf32>
    %12 = arith.mulf %11, %10 : vector<64x128xf32>
    %13 = math.tanh %12 : vector<64x128xf32>
    %cst_7 = arith.constant 1.000000e+00 : f32
    %14 = vector.broadcast %cst_7 : f32 to vector<64x128xf32>
    %15 = arith.addf %14, %13 : vector<64x128xf32>
    %cst_8 = arith.constant 5.000000e-01 : f32
    %16 = vector.broadcast %cst_8 : f32 to vector<64x128xf32>
    %17 = arith.mulf %16, %15 : vector<64x128xf32>
    %18 = arith.mulf %5, %17 : vector<64x128xf32>
    %19 = arith.truncf %18 : vector<64x128xf32> to vector<64x128xbf16>
    %c0_9 = arith.constant 0 : index
    %c0_10 = arith.constant 0 : index
    %20 = vector.load %arg6[%c0_9, %c0_10] : memref<64x128xbf16, #tpu.memory_space<vmem>>, vector<64x128xbf16>
    tpu.vector_store %arg6[%c0_9, %c0_10], %19 {strides = array<i32>} : memref<64x128xbf16, #tpu.memory_space<vmem>>, vector<64x128xbf16>,
    %c0_11 = arith.constant 0 : index
    %c0_12 = arith.constant 0 : index
    %21 = vector.load %arg4[%c0_11, %c0_12] : memref<128x128xbf16, #tpu.memory_space<vmem>>, vector<128x128xbf16>
    %cst_13 = arith.constant dense<0.000000e+00> : vector<64x128xf32>
    %22 = tpu.matmul %19, %21, %cst_13 {dimension_numbers = #tpu.dot_dimension_numbers<[1], [0], [0], [1], [0, 0, 1, 1], [], []>} : vector<64x128xbf16>, vector<128x128xbf16>, vector<64x128xf32> -> vector<64x128xf32>
    %c0_14 = arith.constant 0 : index
    %c0_15 = arith.constant 0 : index
    %23 = vector.load %arg5[%c0_14, %c0_15] : memref<1x128xf32, #tpu.memory_space<vmem>>, vector<1x128xf32>
    %24 = vector.broadcast %23 : vector<1x128xf32> to vector<64x128xf32>
    %25 = arith.addf %22, %24 : vector<64x128xf32>
    %c0_16 = arith.constant 0 : index
    %c0_17 = arith.constant 0 : index
    %26 = vector.load %arg7[%c0_16, %c0_17] : memref<64x128xf32, #tpu.memory_space<vmem>>, vector<64x128xf32>
    tpu.vector_store %arg7[%c0_16, %c0_17], %25 {strides = array<i32>} : memref<64x128xf32, #tpu.memory_space<vmem>>, vector<64x128xf32>,
    return
  }
  func.func @transform_0(%arg0: i32) -> (i32, i32) {
    %c0_i32 = arith.constant 0 : i32
    %c0_i32_0 = arith.constant 0 : i32
    return %arg0, %c0_i32 : i32, i32
  }
  func.func @transform_1(%arg0: i32) -> (i32, i32) {
    %c0_i32 = arith.constant 0 : i32
    %c0_i32_0 = arith.constant 0 : i32
    %c0_i32_1 = arith.constant 0 : i32
    return %c0_i32, %c0_i32_0 : i32, i32
  }
  func.func @transform_2(%arg0: i32) -> (i32, i32) {
    %c0_i32 = arith.constant 0 : i32
    %c0_i32_0 = arith.constant 0 : i32
    %c0_i32_1 = arith.constant 0 : i32
    return %c0_i32, %c0_i32_0 : i32, i32
  }
  func.func @transform_3(%arg0: i32) -> (i32, i32) {
    %c0_i32 = arith.constant 0 : i32
    %c0_i32_0 = arith.constant 0 : i32
    %c0_i32_1 = arith.constant 0 : i32
    return %c0_i32, %c0_i32_0 : i32, i32
  }
  func.func @transform_4(%arg0: i32) -> (i32, i32) {
    %c0_i32 = arith.constant 0 : i32
    %c0_i32_0 = arith.constant 0 : i32
    %c0_i32_1 = arith.constant 0 : i32
    return %c0_i32, %c0_i32_0 : i32, i32
  }
  func.func @transform_5(%arg0: i32) -> (i32, i32) {
    %c0_i32 = arith.constant 0 : i32
    %c0_i32_0 = arith.constant 0 : i32
    return %arg0, %c0_i32 : i32, i32
  }
  func.func @transform_6(%arg0: i32) -> (i32, i32) {
    %c0_i32 = arith.constant 0 : i32
    %c0_i32_0 = arith.constant 0 : i32
    return %arg0, %c0_i32 : i32, i32
  }
}

module attributes {stable_mosaic.version = 11 : i64} {
  func.func @_fused_stage_kernel(%arg0: i32, %arg1: memref<8x1024xbf16, #tpu.memory_space<vmem>>, %arg2: memref<1024x256xbf16, #tpu.memory_space<vmem>>, %arg3: memref<1x256xf32, #tpu.memory_space<vmem>>, %arg4: memref<256x128xbf16, #tpu.memory_space<vmem>>, %arg5: memref<1x128xf32, #tpu.memory_space<vmem>>, %arg6: memref<8x256xbf16, #tpu.memory_space<vmem>>, %arg7: memref<8x128xf32, #tpu.memory_space<vmem>>) attributes {dimension_semantics = [#tpu.dimension_semantics<parallel>], iteration_bounds = array<i64: 1>, scalar_prefetch = 0 : i64, scratch_operands = 0 : i64, tpu.core_type = #tpu.core_type<tc>, window_params = [{transform_indices = @transform_0, window_bounds = array<i64: 8, 1024>}, {pipeline_mode = #tpu.pipeline_mode<synchronous>, transform_indices = @transform_1, window_bounds = array<i64: 1024, 256>}, {pipeline_mode = #tpu.pipeline_mode<synchronous>, transform_indices = @transform_2, window_bounds = array<i64: 1, 256>}, {pipeline_mode = #tpu.pipeline_mode<synchronous>, transform_indices = @transform_3, window_bounds = array<i64: 256, 128>}, {pipeline_mode = #tpu.pipeline_mode<synchronous>, transform_indices = @transform_4, window_bounds = array<i64: 1, 128>}, {transform_indices = @transform_5, window_bounds = array<i64: 8, 256>}, {transform_indices = @transform_6, window_bounds = array<i64: 8, 128>}]} {
    %c0 = arith.constant 0 : index
    %c0_0 = arith.constant 0 : index
    %0 = vector.load %arg1[%c0, %c0_0] : memref<8x1024xbf16, #tpu.memory_space<vmem>>, vector<8x1024xbf16>
    %c0_1 = arith.constant 0 : index
    %c0_2 = arith.constant 0 : index
    %1 = vector.load %arg2[%c0_1, %c0_2] : memref<1024x256xbf16, #tpu.memory_space<vmem>>, vector<1024x256xbf16>
    %cst = arith.constant dense<0.000000e+00> : vector<8x256xf32>
    %2 = tpu.matmul %0, %1, %cst {dimension_numbers = #tpu.dot_dimension_numbers<[1], [0], [0], [1], [0, 0, 1, 1], [], []>} : vector<8x1024xbf16>, vector<1024x256xbf16>, vector<8x256xf32> -> vector<8x256xf32>
    %c0_3 = arith.constant 0 : index
    %c0_4 = arith.constant 0 : index
    %3 = vector.load %arg3[%c0_3, %c0_4] : memref<1x256xf32, #tpu.memory_space<vmem>>, vector<1x256xf32>
    %4 = vector.broadcast %3 : vector<1x256xf32> to vector<8x256xf32>
    %5 = arith.addf %2, %4 : vector<8x256xf32>
    %6 = arith.mulf %5, %5 : vector<8x256xf32>
    %7 = arith.mulf %5, %6 : vector<8x256xf32>
    %cst_5 = arith.constant 4.471500e-02 : f32
    %8 = vector.broadcast %cst_5 : f32 to vector<8x256xf32>
    %9 = arith.mulf %8, %7 : vector<8x256xf32>
    %10 = arith.addf %5, %9 : vector<8x256xf32>
    %cst_6 = arith.constant 0.797884583 : f32
    %11 = vector.broadcast %cst_6 : f32 to vector<8x256xf32>
    %12 = arith.mulf %11, %10 : vector<8x256xf32>
    %13 = math.tanh %12 : vector<8x256xf32>
    %cst_7 = arith.constant 1.000000e+00 : f32
    %14 = vector.broadcast %cst_7 : f32 to vector<8x256xf32>
    %15 = arith.addf %14, %13 : vector<8x256xf32>
    %cst_8 = arith.constant 5.000000e-01 : f32
    %16 = vector.broadcast %cst_8 : f32 to vector<8x256xf32>
    %17 = arith.mulf %16, %15 : vector<8x256xf32>
    %18 = arith.mulf %5, %17 : vector<8x256xf32>
    %19 = arith.truncf %18 : vector<8x256xf32> to vector<8x256xbf16>
    %c0_9 = arith.constant 0 : index
    %c0_10 = arith.constant 0 : index
    %20 = vector.load %arg6[%c0_9, %c0_10] : memref<8x256xbf16, #tpu.memory_space<vmem>>, vector<8x256xbf16>
    tpu.vector_store %arg6[%c0_9, %c0_10], %19 {strides = array<i32>} : memref<8x256xbf16, #tpu.memory_space<vmem>>, vector<8x256xbf16>,
    %c0_11 = arith.constant 0 : index
    %c0_12 = arith.constant 0 : index
    %21 = vector.load %arg4[%c0_11, %c0_12] : memref<256x128xbf16, #tpu.memory_space<vmem>>, vector<256x128xbf16>
    %cst_13 = arith.constant dense<0.000000e+00> : vector<8x128xf32>
    %22 = tpu.matmul %19, %21, %cst_13 {dimension_numbers = #tpu.dot_dimension_numbers<[1], [0], [0], [1], [0, 0, 1, 1], [], []>} : vector<8x256xbf16>, vector<256x128xbf16>, vector<8x128xf32> -> vector<8x128xf32>
    %c0_14 = arith.constant 0 : index
    %c0_15 = arith.constant 0 : index
    %23 = vector.load %arg5[%c0_14, %c0_15] : memref<1x128xf32, #tpu.memory_space<vmem>>, vector<1x128xf32>
    %24 = vector.broadcast %23 : vector<1x128xf32> to vector<8x128xf32>
    %25 = arith.addf %22, %24 : vector<8x128xf32>
    %c0_16 = arith.constant 0 : index
    %c0_17 = arith.constant 0 : index
    %26 = vector.load %arg7[%c0_16, %c0_17] : memref<8x128xf32, #tpu.memory_space<vmem>>, vector<8x128xf32>
    tpu.vector_store %arg7[%c0_16, %c0_17], %25 {strides = array<i32>} : memref<8x128xf32, #tpu.memory_space<vmem>>, vector<8x128xf32>,
    return
  }
  func.func @transform_0(%arg0: i32) -> (i32, i32) {
    %c0_i32 = arith.constant 0 : i32
    %c0_i32_0 = arith.constant 0 : i32
    return %arg0, %c0_i32 : i32, i32
  }
  func.func @transform_1(%arg0: i32) -> (i32, i32) {
    %c0_i32 = arith.constant 0 : i32
    %c0_i32_0 = arith.constant 0 : i32
    %c0_i32_1 = arith.constant 0 : i32
    return %c0_i32, %c0_i32_0 : i32, i32
  }
  func.func @transform_2(%arg0: i32) -> (i32, i32) {
    %c0_i32 = arith.constant 0 : i32
    %c0_i32_0 = arith.constant 0 : i32
    %c0_i32_1 = arith.constant 0 : i32
    return %c0_i32, %c0_i32_0 : i32, i32
  }
  func.func @transform_3(%arg0: i32) -> (i32, i32) {
    %c0_i32 = arith.constant 0 : i32
    %c0_i32_0 = arith.constant 0 : i32
    %c0_i32_1 = arith.constant 0 : i32
    return %c0_i32, %c0_i32_0 : i32, i32
  }
  func.func @transform_4(%arg0: i32) -> (i32, i32) {
    %c0_i32 = arith.constant 0 : i32
    %c0_i32_0 = arith.constant 0 : i32
    %c0_i32_1 = arith.constant 0 : i32
    return %c0_i32, %c0_i32_0 : i32, i32
  }
  func.func @transform_5(%arg0: i32) -> (i32, i32) {
    %c0_i32 = arith.constant 0 : i32
    %c0_i32_0 = arith.constant 0 : i32
    return %arg0, %c0_i32 : i32, i32
  }
  func.func @transform_6(%arg0: i32) -> (i32, i32) {
    %c0_i32 = arith.constant 0 : i32
    %c0_i32_0 = arith.constant 0 : i32
    return %arg0, %c0_i32 : i32, i32
  }
}

</mosaic_0001>

<llo_original>
// kernel: image_encoder_forward.3
$region0: #{image_encoder_forward.3}
  #allocation0 [shape = 'u32[]', space=smem, size = 0x4, offset = 0x4, fixed_abs, tag = 'smem constant byte address 0x4 - core index']
  #allocation1 [shape = 'u32[72,128]{1,0:T(1,128)}', space=vmem, size = 0x9000, scoped, tag = 'internal scratch']
  %s0 = inlined_call_operand.vmem [shape: bf16[128,12], index: 0, kind: input, shape index: {}]
  %s1 = inlined_call_operand.vmem [shape: bf16[12,128], index: 1, kind: input, shape index: {}]
  %s2 = inlined_call_operand.vmem [shape: f32[1,128], index: 2, kind: input, shape index: {}]
  %s3 = inlined_call_operand.vmem [shape: bf16[128,128], index: 3, kind: input, shape index: {}]
  %s4 = inlined_call_operand.vmem [shape: f32[1,128], index: 4, kind: input, shape index: {}]
  %s5 = inlined_call_operand.vmem [shape: bf16[128,128], index: 5, kind: output, shape index: {0}]
  %s6 = inlined_call_operand.hbm [shape: f32[128,128], index: 6, kind: output, shape index: {1}]
  %7 = xla_tuple %s5, %s6
  %s8 = sld [smem:[#allocation0]]
  $region61: #{image_encoder_forward.3} parent=0
    _
  %s10 = ssub.s32 1, %s8
  %s11 = scalar_select 0, %s10, %s8
  $region1: #{image_encoder_forward.3} parent=0
    #allocation2 [shape = 'u8[65536]{0}', space=vmem, size = 0x10000, scoped, tag = 'output window, operand 1']
    #allocation3 [shape = 's32[2]{0}', space=sflag, size = 0x8, scoped, tag = 'scoped memory for image_encoder_forward.3']
    %12 = vsyncpa [#allocation3], 0
    %s13 = scalar_lea.sflag [#allocation3], 1
    %14 = vsyncpa %s13, 0
    loop: start=0, step=1, limit=4
    $region2: #{image_encoder_forward.3} parent=1 // loop_pre_header
      _
    $region3: #{image_encoder_forward.3} parent=1 // loop_header
      %s16 = sphi 0, %s20
      %p17 = scmp.ge.s32.totalorder %s16, 4
      %s26 = sphi 0, %s28
      %s29 = sphi 0, %s26
      %s30 = sphi 0, %s29
      %s46 = sphi 0, %s30
      %s50 = sphi 0, %s50
      %s52 = sphi 0, %s50
      %s53 = sphi 0, %s52
      %s67 = sphi 0, %s53
      %s71 = sphi 0, %s71
      %s73 = sphi 0, %s71
      %s74 = sphi 0, %s73
      %s88 = sphi 0, %s74
      %s92 = sphi 0, %s92
      %s94 = sphi 0, %s92
      %s95 = sphi 0, %s94
      %s109 = sphi 0, %s95
      %s113 = sphi 0, %s113
      %s115 = sphi 0, %s113
      %s116 = sphi 0, %s115
      %s130 = sphi 0, %s116
      %s136 = sphi 0, %s138
      %s139 = sphi 0, %s136
      %s140 = sphi 0, %s139
      %s156 = sphi 0, %s140
      %s162 = sphi 0, %s164
      %s165 = sphi 0, %s162
      %s166 = sphi 0, %s165
      %s182 = sphi 0, %s166
    $region4: #{image_encoder_forward.3} parent=1 // loop_header_branch
      %19 = sbr.rel (%p17) target = $region8
    $region5: #{image_encoder_forward.3} parent=1 // loop_body
      %s21 = ssub.s32 %s16, 1
      %s22 = ssub.s32 %s16, 2
      %s23 = sadd.s32 %s16, 1
      %s24 = ssub.s32 %s16, %s23
      %p25 = scmp.eq.s32.totalorder %s24, 0
      %s27 = sadd.s32 %s26, 1
      %s28 = scalar_select %p25, %s26, %s27
      %p31 = pneg %p25
      %p32 = scmp.eq.s32.totalorder %s16, 1
      %p33 = por %p31, %p32
      %p34 = scmp.ne.s32.totalorder %s26, %s29
      %p35 = scmp.eq.s32.totalorder %s16, 0
      %p36 = por %p34, %p35
      %p37 = scmp.ne.s32.totalorder %s26, %s29
      %p38 = scmp.eq.s32.totalorder %s21, 1
      %p39 = por %p37, %p38
      %p40 = scmp.ne.s32.totalorder %s29, %s30
      %p41 = scmp.eq.s32.totalorder %s21, 0
      %p42 = por %p40, %p41
      %p43 = scmp.ne.s32.totalorder %s29, %s30
      %p44 = scmp.eq.s32.totalorder %s22, 1
      %p45 = por %p43, %p44
      %p47 = scmp.ne.s32.totalorder %s30, %s46
      %p48 = scmp.eq.s32.totalorder %s22, 0
      %p49 = por %p47, %p48
      %s51 = sadd.s32 %s50, 1
      %p54 = scmp.eq.s32.totalorder %s16, 1
      %p55 = scmp.ne.s32.totalorder %s50, %s52
      %p56 = scmp.eq.s32.totalorder %s16, 0
      %p57 = por %p55, %p56
      %p58 = scmp.ne.s32.totalorder %s50, %s52
      %p59 = scmp.eq.s32.totalorder %s21, 1
      %p60 = por %p58, %p59
      %p61 = scmp.ne.s32.totalorder %s52, %s53
      %p62 = scmp.eq.s32.totalorder %s21, 0
      %p63 = por %p61, %p62
      %p64 = scmp.ne.s32.totalorder %s52, %s53
      %p65 = scmp.eq.s32.totalorder %s22, 1
      %p66 = por %p64, %p65
      %p68 = scmp.ne.s32.totalorder %s53, %s67
      %p69 = scmp.eq.s32.totalorder %s22, 0
      %p70 = por %p68, %p69
      %s72 = sadd.s32 %s71, 1
      %p75 = scmp.eq.s32.totalorder %s16, 1
      %p76 = scmp.ne.s32.totalorder %s71, %s73
      %p77 = scmp.eq.s32.totalorder %s16, 0
      %p78 = por %p76, %p77
      %p79 = scmp.ne.s32.totalorder %s71, %s73
      %p80 = scmp.eq.s32.totalorder %s21, 1
      %p81 = por %p79, %p80
      %p82 = scmp.ne.s32.totalorder %s73, %s74
      %p83 = scmp.eq.s32.totalorder %s21, 0
      %p84 = por %p82, %p83
      %p85 = scmp.ne.s32.totalorder %s73, %s74
      %p86 = scmp.eq.s32.totalorder %s22, 1
      %p87 = por %p85, %p86
      %p89 = scmp.ne.s32.totalorder %s74, %s88
      %p90 = scmp.eq.s32.totalorder %s22, 0
      %p91 = por %p89, %p90
      %s93 = sadd.s32 %s92, 1
      %p96 = scmp.eq.s32.totalorder %s16, 1
      %p97 = scmp.ne.s32.totalorder %s92, %s94
      %p98 = scmp.eq.s32.totalorder %s16, 0
      %p99 = por %p97, %p98
      %p100 = scmp.ne.s32.totalorder %s92, %s94
      %p101 = scmp.eq.s32.totalorder %s21, 1
      %p102 = por %p100, %p101
      %p103 = scmp.ne.s32.totalorder %s94, %s95
      %p104 = scmp.eq.s32.totalorder %s21, 0
      %p105 = por %p103, %p104
      %p106 = scmp.ne.s32.totalorder %s94, %s95
      %p107 = scmp.eq.s32.totalorder %s22, 1
      %p108 = por %p106, %p107
      %p110 = scmp.ne.s32.totalorder %s95, %s109
      %p111 = scmp.eq.s32.totalorder %s22, 0
      %p112 = por %p110, %p111
      %s114 = sadd.s32 %s113, 1
      %p117 = scmp.eq.s32.totalorder %s16, 1
      %p118 = scmp.ne.s32.totalorder %s113, %s115
      %p119 = scmp.eq.s32.totalorder %s16, 0
      %p120 = por %p118, %p119
      %p121 = scmp.ne.s32.totalorder %s113, %s115
      %p122 = scmp.eq.s32.totalorder %s21, 1
      %p123 = por %p121, %p122
      %p124 = scmp.ne.s32.totalorder %s115, %s116
      %p125 = scmp.eq.s32.totalorder %s21, 0
      %p126 = por %p124, %p125
      %p127 = scmp.ne.s32.totalorder %s115, %s116
      %p128 = scmp.eq.s32.totalorder %s22, 1
      %p129 = por %p127, %p128
      %p131 = scmp.ne.s32.totalorder %s116, %s130
      %p132 = scmp.eq.s32.totalorder %s22, 0
      %p133 = por %p131, %p132
      %s134 = ssub.s32 %s16, %s23
      %p135 = scmp.eq.s32.totalorder %s134, 0
      %s137 = sadd.s32 %s136, 1
      %s138 = scalar_select %p135, %s136, %s137
      %p141 = pneg %p135
      %p142 = scmp.eq.s32.totalorder %s16, 1
      %p143 = por %p141, %p142
      %p144 = scmp.ne.s32.totalorder %s136, %s139
      %p145 = scmp.eq.s32.totalorder %s16, 0
      %p146 = por %p144, %p145
      %p147 = scmp.ne.s32.totalorder %s136, %s139
      %p148 = scmp.eq.s32.totalorder %s21, 1
      %p149 = por %p147, %p148
      %p150 = scmp.ne.s32.totalorder %s139, %s140
      %p151 = scmp.eq.s32.totalorder %s21, 0
      %p152 = por %p150, %p151
      %p153 = scmp.ne.s32.totalorder %s139, %s140
      %p154 = scmp.eq.s32.totalorder %s22, 1
      %p155 = por %p153, %p154
      %p157 = scmp.ne.s32.totalorder %s140, %s156
      %p158 = scmp.eq.s32.totalorder %s22, 0
      %p159 = por %p157, %p158
      %s160 = ssub.s32 %s16, %s23
      %p161 = scmp.eq.s32.totalorder %s160, 0
      %s163 = sadd.s32 %s162, 1
      %s164 = scalar_select %p161, %s162, %s163
      %p167 = pneg %p161
      %p168 = scmp.eq.s32.totalorder %s16, 1
      %p169 = por %p167, %p168
      %p170 = scmp.ne.s32.totalorder %s162, %s165
      %p171 = scmp.eq.s32.totalorder %s16, 0
      %p172 = por %p170, %p171
      %p173 = scmp.ne.s32.totalorder %s162, %s165
      %p174 = scmp.eq.s32.totalorder %s21, 1
      %p175 = por %p173, %p174
      %p176 = scmp.ne.s32.totalorder %s165, %s166
      %p177 = scmp.eq.s32.totalorder %s21, 0
      %p178 = por %p176, %p177
      %p179 = scmp.ne.s32.totalorder %s165, %s166
      %p180 = scmp.eq.s32.totalorder %s22, 1
      %p181 = por %p179, %p180
      %p183 = scmp.ne.s32.totalorder %s166, %s182
      %p184 = scmp.eq.s32.totalorder %s22, 0
      %p185 = por %p183, %p184
      %p186 = scmp.le.s32.totalorder 1, %s16
      %p187 = scmp.lt.s32.totalorder %s16, 3
      %p188 = pnand %p186, %p187
      %p189 = pneg %p188
      // Predicated region
      $region9: #{image_encoder_forward.3} parent=5 // pred_check
        _
      $region10: #{image_encoder_forward.3} parent=5 // pred_check_branch
        %191 = sbr.rel (%p188) target = $region12
      $region11: #{image_encoder_forward.3} parent=5 // pred_region
        %s192 = ssub.s32 %s16, 1
        // Predicated region
        $region13: #{image_encoder_forward.3} parent=11 // pred_check
          %p193 = pneg %p63
        $region14: #{image_encoder_forward.3} parent=11 // pred_check_branch
          %195 = sbr.rel (%p193) target = $region16
        $region15: #{image_encoder_forward.3} parent=11 // pred_region
          _
        $region16: #{image_encoder_forward.3} parent=11 // pred_fallthru
          _
        // Predicated region
        $region17: #{image_encoder_forward.3} parent=11 // pred_check
          %p196 = pneg %p84
        $region18: #{image_encoder_forward.3} parent=11 // pred_check_branch
          %198 = sbr.rel (%p196) target = $region20
        $region19: #{image_encoder_forward.3} parent=11 // pred_region
          _
        $region20: #{image_encoder_forward.3} parent=11 // pred_fallthru
          _
        // Predicated region
        $region21: #{image_encoder_forward.3} parent=11 // pred_check
          %p199 = pneg %p105
        $region22: #{image_encoder_forward.3} parent=11 // pred_check_branch
          %201 = sbr.rel (%p199) target = $region24
        $region23: #{image_encoder_forward.3} parent=11 // pred_region
          _
        $region24: #{image_encoder_forward.3} parent=11 // pred_fallthru
          _
        // Predicated region
        $region25: #{image_encoder_forward.3} parent=11 // pred_check
          %p202 = pneg %p126
        $region26: #{image_encoder_forward.3} parent=11 // pred_check_branch
          %204 = sbr.rel (%p202) target = $region28
        $region27: #{image_encoder_forward.3} parent=11 // pred_region
          _
        $region28: #{image_encoder_forward.3} parent=11 // pred_fallthru
          _
      $region12: #{image_encoder_forward.3} parent=5 // pred_fallthru
        _
      %p205 = scmp.lt.s32.totalorder %s16, 2
      // Predicated region
      $region29: #{image_encoder_forward.3} parent=5 // pred_check
        %p206 = pneg %p205
      $region30: #{image_encoder_forward.3} parent=5 // pred_check_branch
        %208 = sbr.rel (%p206) target = $region32
      $region31: #{image_encoder_forward.3} parent=5 // pred_region
        // Predicated region
        $region33: #{image_encoder_forward.3} parent=31 // pred_check
          %p209 = pneg %p36
        $region34: #{image_encoder_forward.3} parent=31 // pred_check_branch
          %211 = sbr.rel (%p209) target = $region36
        $region35: #{image_encoder_forward.3} parent=31 // pred_region
          %s212 = smul.u32 8, %s16
          %p213 = scmp.lt.s32.totalorder %s212, 15
          %s214 = scalar_select %p213, %s212, 15
          %s215 = smul.addr %s214, 4
          %s216 = scalar_lea.vmem %s0, %s215
          %s217 = smul.u32 8, %s16
        $region36: #{image_encoder_forward.3} parent=31 // pred_fallthru
          _
      $region32: #{image_encoder_forward.3} parent=5 // pred_fallthru
        _
      %p218 = scmp.le.s32.totalorder 1, %s16
      %p219 = scmp.lt.s32.totalorder %s16, 3
      %p220 = pnand %p218, %p219
      %p221 = pneg %p220
      // Predicated region
      $region37: #{image_encoder_forward.3} parent=5 // pred_check
        _
      $region38: #{image_encoder_forward.3} parent=5 // pred_check_branch
        %223 = sbr.rel (%p220) target = $region40
      $region39: #{image_encoder_forward.3} parent=5 // pred_region
        %s224 = ssub.s32 %s16, 1
        %s225 = smul.u32 8, %s21
        %p226 = scmp.lt.s32.totalorder %s225, 15
        %s227 = scalar_select %p226, %s225, 15
        %s228 = smul.addr %s227, 4
        %s229 = scalar_lea.vmem %s0, %s228
        %p230 = pneg %p42
        %p231 = pneg %p39
        %p232 = pneg %p63
        %p233 = pneg %p60
        %p234 = pneg %p84
        %p235 = pneg %p81
        %p236 = pneg %p105
        %p237 = pneg %p102
        %p238 = pneg %p126
        %p239 = pneg %p123
        %p240 = pneg %p152
        %p241 = pneg %p149
        %s242 = smul.u32 8, %s21
        %p243 = scmp.lt.s32.totalorder %s242, 15
        %s244 = scalar_select %p243, %s242, 15
        %s245 = smul.addr %s244, 4
        %s246 = scalar_lea.vmem %s5, %s245
        %p247 = pneg %p178
        %p248 = pneg %p175
        %s249 = sand.u32 %s165, 1
        %s250 = scalar_lea.sflag [#allocation3], %s249
        %s251 = sand.u32 %s165, 1
        %s252 = smul.addr %s251, 64
        %s253 = scalar_lea.vmem [#allocation2], %s252
        %s254 = smul.u32 8, %s21
        %p255 = scmp.lt.s32.totalorder %s254, 15
        %s256 = scalar_select %p255, %s254, 15
        %s257 = smul.addr %s256, 4
        %s258 = scalar_lea.vmem %s0, %s257
        %s259 = smul.u32 8, %s21
        %s260 = smul.u32 8, %s21
        %p261 = scmp.lt.s32.totalorder %s260, 15
        %s262 = scalar_select %p261, %s260, 15
        %s263 = smul.addr %s262, 4
        %s264 = scalar_lea.vmem %s5, %s263
        %s265 = smul.u32 8, %s21
        %s266 = smul.u32 8, %s21
        %v268 = vld [vmem:[%s258] sm:$0xf]
        %v269 = vld [vmem:[%s258 + $0x4] sm:$0xf]
        %v270 = vld [vmem:[%s258 + $0x8] sm:$0xf]
        %v271 = vld [vmem:[%s258 + $0xc] sm:$0xf]
        %v272 = vld [vmem:[%s258 + $0x10] sm:$0xf]
        %v273 = vld [vmem:[%s258 + $0x14] sm:$0xf]
        %v274 = vld [vmem:[%s258 + $0x18] sm:$0xf]
        %v275 = vld [vmem:[%s258 + $0x1c] sm:$0xf]
        %v276 = vld [vmem:[%s1] sm:$0xf]
        %v277 = vld [vmem:[%s1 + $0x4] sm:$0x3]
        %v278 = vld [vmem:[%s2] sm:$0x1]
        %v280 = vperm.slane %v278, 0
        %v290 = vunpack.c.l.b16 %v268
        %v291 = vunpack.c.l.b16 %v269
        %v292 = vunpack.c.l.b16 %v270
        %v293 = vunpack.c.l.b16 %v271
        %v294 = vunpack.c.l.b16 %v272
        %v295 = vunpack.c.l.b16 %v273
        %v296 = vunpack.c.l.b16 %v274
        %v297 = vunpack.c.l.b16 %v275
        %v298 = vpack.c.b16 %v291, %v290
        %v299 = vpack.c.b16 %v293, %v292
        %v300 = vpack.c.b16 %v295, %v294
        %v301 = vpack.c.b16 %v297, %v296
        %v304 = vunpack.c.l.b16 %v276
        %v305 = vunpack.c.l.b16 %v277
        %v306 = vpack.c.b16 %v305, %v304
        %vm307 = vcmask 97280
        %v309 = vsel %vm307, %v298, 0
        %v312 = vsel %vm307, %v299, 0
        %v315 = vsel %vm307, %v300, 0
        %v318 = vsel %vm307, %v301, 0
        %vm320 = vcmask 1045504
        %v322 = vsel %vm320, %v306, 0
        %324 = vmatpush.bf16.msra.mxu0 0
        %325 = vmatpush.bf16.msra.mxu0 0
        %326 = vmatpush.bf16.msra.mxu0 0
        %327 = vmatpush.bf16.msra.mxu0 0
        %328 = vmatpush.bf16.msra.mxu0 0
        %329 = vmatpush.bf16.msra.mxu0 0
        %330 = vmatpush.bf16.msra.mxu0 0
        %331 = vmatpush.bf16.msra.mxu0 %v322
        %332 = vmatmul.bf16.gmra.mxu0 %v309
        %v333 = vpop.f32.mrf.mxu0
        %v334 = vadd.f32 %v280, %v333
        %v335 = vpop.f32.mrf.mxu0
        %v336 = vadd.f32 %v280, %v335
        %337 = vmatmul.bf16.gmra.mxu0 %v312
        %v338 = vpop.f32.mrf.mxu0
        %v339 = vadd.f32 %v280, %v338
        %v340 = vpop.f32.mrf.mxu0
        %v341 = vadd.f32 %v280, %v340
        %342 = vmatmul.bf16.gmra.mxu0 %v315
        %v343 = vpop.f32.mrf.mxu0
        %v344 = vadd.f32 %v280, %v343
        %v345 = vpop.f32.mrf.mxu0
        %v346 = vadd.f32 %v280, %v345
        %347 = vmatmul.bf16.gmra.mxu0 %v318
        %v348 = vpop.f32.mrf.mxu0
        %v349 = vadd.f32 %v280, %v348
        %v350 = vpop.f32.mrf.mxu0
        %v351 = vadd.f32 %v280, %v350
        %352 = vdwg.mxu0
        %v353 = vmul.f32 %v334, %v334
        %v354 = vmul.f32 %v336, %v336
        %v355 = vmul.f32 %v339, %v339
        %v356 = vmul.f32 %v341, %v341
        %v357 = vmul.f32 %v344, %v344
        %v358 = vmul.f32 %v346, %v346
        %v359 = vmul.f32 %v349, %v349
        %v360 = vmul.f32 %v351, %v351
        %v361 = vmul.f32 %v334, %v353
        %v362 = vmul.f32 %v336, %v354
        %v363 = vmul.f32 %v339, %v355
        %v364 = vmul.f32 %v341, %v356
        %v365 = vmul.f32 %v344, %v357
        %v366 = vmul.f32 %v346, %v358
        %v367 = vmul.f32 %v349, %v359
        %v368 = vmul.f32 %v351, %v360
        %v369 = vmul.f32 %v361, 0.044715
        %v370 = vmul.f32 %v362, 0.044715
        %v371 = vmul.f32 %v363, 0.044715
        %v372 = vmul.f32 %v364, 0.044715
        %v373 = vmul.f32 %v365, 0.044715
        %v374 = vmul.f32 %v366, 0.044715
        %v375 = vmul.f32 %v367, 0.044715
        %v376 = vmul.f32 %v368, 0.044715
        %v377 = vadd.f32 %v334, %v369
        %v378 = vadd.f32 %v336, %v370
        %v379 = vadd.f32 %v339, %v371
        %v380 = vadd.f32 %v341, %v372
        %v381 = vadd.f32 %v344, %v373
        %v382 = vadd.f32 %v346, %v374
        %v383 = vadd.f32 %v349, %v375
        %v384 = vadd.f32 %v351, %v376
        %v385 = vmul.f32 %v377, 0.7978846
        %v386 = vmul.f32 %v378, 0.7978846
        %v387 = vmul.f32 %v379, 0.7978846
        %v388 = vmul.f32 %v380, 0.7978846
        %v389 = vmul.f32 %v381, 0.7978846
        %v390 = vmul.f32 %v382, 0.7978846
        %v391 = vmul.f32 %v383, 0.7978846
        %v392 = vmul.f32 %v384, 0.7978846
        %v393 = vtanh.pop %v385
        %v394 = vtanh.pop %v386
        %v395 = vtanh.pop %v387
        %v396 = vtanh.pop %v388
        %v397 = vtanh.pop %v389
        %v398 = vtanh.pop %v390
        %v399 = vtanh.pop %v391
        %v400 = vtanh.pop %v392
        %v401 = vadd.f32 %v393, 1.0
        %v402 = vadd.f32 %v394, 1.0
        %v403 = vadd.f32 %v395, 1.0
        %v404 = vadd.f32 %v396, 1.0
        %v405 = vadd.f32 %v397, 1.0
        %v406 = vadd.f32 %v398, 1.0
        %v407 = vadd.f32 %v399, 1.0
        %v408 = vadd.f32 %v400, 1.0
        %v409 = vmul.f32 %v401, 0.5
        %v410 = vmul.f32 %v402, 0.5
        %v411 = vmul.f32 %v403, 0.5
        %v412 = vmul.f32 %v404, 0.5
        %v413 = vmul.f32 %v405, 0.5
        %v414 = vmul.f32 %v406, 0.5
        %v415 = vmul.f32 %v407, 0.5
        %v416 = vmul.f32 %v408, 0.5
        %v417 = vmul.f32 %v334, %v409
        %v418 = vmul.f32 %v336, %v410
        %v419 = vmul.f32 %v339, %v411
        %v420 = vmul.f32 %v341, %v412
        %v421 = vmul.f32 %v344, %v413
        %v422 = vmul.f32 %v346, %v414
        %v423 = vmul.f32 %v349, %v415
        %v424 = vmul.f32 %v351, %v416
        %v425 = vpack.c.bf16 %v417, %v417
        %v426 = vpack.c.bf16 %v418, %v418
        %v427 = vpack.c.bf16 %v419, %v419
        %v428 = vpack.c.bf16 %v420, %v420
        %v429 = vpack.c.bf16 %v421, %v421
        %v430 = vpack.c.bf16 %v422, %v422
        %v431 = vpack.c.bf16 %v423, %v423
        %v432 = vpack.c.bf16 %v424, %v424
        %433 = vst [vmem:[%s264] sm:$0xf] %v425
        %434 = vst [vmem:[%s264 + $0x4] sm:$0xf] %v426
        %435 = vst [vmem:[%s264 + $0x8] sm:$0xf] %v427
        %436 = vst [vmem:[%s264 + $0xc] sm:$0xf] %v428
        %437 = vst [vmem:[%s264 + $0x10] sm:$0xf] %v429
        %438 = vst [vmem:[%s264 + $0x14] sm:$0xf] %v430
        %439 = vst [vmem:[%s264 + $0x18] sm:$0xf] %v431
        %440 = vst [vmem:[%s264 + $0x1c] sm:$0xf] %v432
        %v441 = vld [vmem:[%s3] sm:$0xf]
        %v442 = vld [vmem:[%s3 + $0x4] sm:$0xf]
        %v443 = vld [vmem:[%s3 + $0x8] sm:$0xf]
        %v444 = vld [vmem:[%s3 + $0xc] sm:$0xf]
        %v445 = vld [vmem:[%s3 + $0x10] sm:$0xf]
        %v446 = vld [vmem:[%s3 + $0x14] sm:$0xf]
        %v447 = vld [vmem:[%s3 + $0x18] sm:$0xf]
        %v448 = vld [vmem:[%s3 + $0x1c] sm:$0xf]
        %v449 = vld [vmem:[%s3 + $0x20] sm:$0xf]
        %v450 = vld [vmem:[%s3 + $0x24] sm:$0xf]
        %v451 = vld [vmem:[%s3 + $0x28] sm:$0xf]
        %v452 = vld [vmem:[%s3 + $0x2c] sm:$0xf]
        %v453 = vld [vmem:[%s3 + $0x30] sm:$0xf]
        %v454 = vld [vmem:[%s3 + $0x34] sm:$0xf]
        %v455 = vld [vmem:[%s3 + $0x38] sm:$0xf]
        %v456 = vld [vmem:[%s3 + $0x3c] sm:$0xf]
        %v457 = vld [vmem:[%s4] sm:$0x1]
        %v459 = vperm.slane %v457, 0
        %v469 = vunpack.c.l.b16 %v425
        %v470 = vunpack.c.l.b16 %v426
        %v471 = vunpack.c.l.b16 %v427
        %v472 = vunpack.c.l.b16 %v428
        %v473 = vunpack.c.l.b16 %v429
        %v474 = vunpack.c.l.b16 %v430
        %v475 = vunpack.c.l.b16 %v431
        %v476 = vunpack.c.l.b16 %v432
        %v477 = vpack.c.b16 %v470, %v469
        %v478 = vpack.c.b16 %v472, %v471
        %v479 = vpack.c.b16 %v474, %v473
        %v480 = vpack.c.b16 %v476, %v475
        %v501 = vunpack.c.l.b16 %v441
        %v502 = vunpack.c.l.b16 %v442
        %v503 = vunpack.c.l.b16 %v443
        %v504 = vunpack.c.l.b16 %v444
        %v505 = vunpack.c.l.b16 %v445
        %v506 = vunpack.c.l.b16 %v446
        %v507 = vunpack.c.l.b16 %v447
        %v508 = vunpack.c.l.b16 %v448
        %v509 = vunpack.c.l.b16 %v449
        %v510 = vunpack.c.l.b16 %v450
        %v511 = vunpack.c.l.b16 %v451
        %v512 = vunpack.c.l.b16 %v452
        %v513 = vunpack.c.l.b16 %v453
        %v514 = vunpack.c.l.b16 %v454
        %v515 = vunpack.c.l.b16 %v455
        %v516 = vunpack.c.l.b16 %v456
        %v517 = vpack.c.b16 %v502, %v501
        %v518 = vpack.c.b16 %v504, %v503
        %v519 = vpack.c.b16 %v506, %v505
        %v520 = vpack.c.b16 %v508, %v507
        %v521 = vpack.c.b16 %v510, %v509
        %v522 = vpack.c.b16 %v512, %v511
        %v523 = vpack.c.b16 %v514, %v513
        %v524 = vpack.c.b16 %v516, %v515
        %533 = vmatpush.bf16.msra.mxu0 %v524
        %534 = vmatpush.bf16.msra.mxu0 %v523
        %535 = vmatpush.bf16.msra.mxu0 %v522
        %536 = vmatpush.bf16.msra.mxu0 %v521
        %537 = vmatpush.bf16.msra.mxu0 %v520
        %538 = vmatpush.bf16.msra.mxu0 %v519
        %539 = vmatpush.bf16.msra.mxu0 %v518
        %540 = vmatpush.bf16.msra.mxu0 %v517
        %541 = vmatmul.bf16.gmra.mxu0 %v477
        %v542 = vpop.f32.mrf.mxu0
        %v543 = vadd.f32 %v459, %v542
        %v544 = vpop.f32.mrf.mxu0
        %v545 = vadd.f32 %v459, %v544
        %546 = vmatmul.bf16.gmra.mxu0 %v478
        %v547 = vpop.f32.mrf.mxu0
        %v548 = vadd.f32 %v459, %v547
        %v549 = vpop.f32.mrf.mxu0
        %v550 = vadd.f32 %v459, %v549
        %551 = vmatmul.bf16.gmra.mxu0 %v479
        %v552 = vpop.f32.mrf.mxu0
        %v553 = vadd.f32 %v459, %v552
        %v554 = vpop.f32.mrf.mxu0
        %v555 = vadd.f32 %v459, %v554
        %556 = vmatmul.bf16.gmra.mxu0 %v480
        %v557 = vpop.f32.mrf.mxu0
        %v558 = vadd.f32 %v459, %v557
        %v559 = vpop.f32.mrf.mxu0
        %v560 = vadd.f32 %v459, %v559
        %561 = vdwg.mxu0
        %562 = vst [vmem:[%s253] sm:$0xff] %v543
        %563 = vst [vmem:[%s253 + $0x8] sm:$0xff] %v545
        %564 = vst [vmem:[%s253 + $0x10] sm:$0xff] %v548
        %565 = vst [vmem:[%s253 + $0x18] sm:$0xff] %v550
        %566 = vst [vmem:[%s253 + $0x20] sm:$0xff] %v553
        %567 = vst [vmem:[%s253 + $0x28] sm:$0xff] %v555
        %568 = vst [vmem:[%s253 + $0x30] sm:$0xff] %v558
        %569 = vst [vmem:[%s253 + $0x38] sm:$0xff] %v560
        %s570 = smul.u32 8, %s21
        %p571 = scmp.lt.s32.totalorder %s570, 15
        %s572 = scalar_select %p571, %s570, 15
        %s573 = smul.addr %s572, 4
        %s574 = scalar_lea.vmem %s5, %s573
        %s575 = sand.u32 %s165, 1
        %s576 = scalar_lea.sflag [#allocation3], %s575
        %s577 = sand.u32 %s165, 1
        %s578 = smul.addr %s577, 64
        %s579 = scalar_lea.vmem [#allocation2], %s578
        // Predicated region
        $region41: #{image_encoder_forward.3} parent=39 // pred_check
          %p580 = pneg %p149
        $region42: #{image_encoder_forward.3} parent=39 // pred_check_branch
          %582 = sbr.rel (%p580) target = $region44
        $region43: #{image_encoder_forward.3} parent=39 // pred_region
          %s583 = smul.u32 8, %s21
        $region44: #{image_encoder_forward.3} parent=39 // pred_fallthru
          _
        // Predicated region
        $region45: #{image_encoder_forward.3} parent=39 // pred_check
          %p584 = pneg %p175
        $region46: #{image_encoder_forward.3} parent=39 // pred_check_branch
          %586 = sbr.rel (%p584) target = $region48
        $region47: #{image_encoder_forward.3} parent=39 // pred_region
          %s587 = smul.u32 8, %s21
          %589 = vsyncadd %s576, 0
          %s590 = smul.addr %s587, 8
          %s591 = scalar_lea.hbm %s6, %s590
          %s592 = sshll.u32 %s579, 4
          %s593 = int_to_ptr.vmem [resolvable:$true] %s592
          %s594 = sshll.u32 %s591, 4
          %s595 = int_to_ptr.hbm [resolvable:$true] %s594
          %600 = dma.vmem_to_hbm [thread:$0]  %s593, 1024, %s595, %s576, 128, 128, 8
        $region48: #{image_encoder_forward.3} parent=39 // pred_fallthru
          _
      $region40: #{image_encoder_forward.3} parent=5 // pred_fallthru
        _
      %p601 = scmp.le.s32.totalorder 2, %s16
      // Predicated region
      $region49: #{image_encoder_forward.3} parent=5 // pred_check
        %p602 = pneg %p601
      $region50: #{image_encoder_forward.3} parent=5 // pred_check_branch
        %604 = sbr.rel (%p602) target = $region52
      $region51: #{image_encoder_forward.3} parent=5 // pred_region
        %s605 = ssub.s32 %s16, 2
        // Predicated region
        $region53: #{image_encoder_forward.3} parent=51 // pred_check
          %p606 = pneg %p155
        $region54: #{image_encoder_forward.3} parent=51 // pred_check_branch
          %608 = sbr.rel (%p606) target = $region56
        $region55: #{image_encoder_forward.3} parent=51 // pred_region
          %s609 = smul.u32 8, %s22
          %p610 = scmp.lt.s32.totalorder %s609, 15
          %s611 = scalar_select %p610, %s609, 15
          %s612 = smul.addr %s611, 4
          %s613 = scalar_lea.vmem %s5, %s612
        $region56: #{image_encoder_forward.3} parent=51 // pred_fallthru
          _
        // Predicated region
        $region57: #{image_encoder_forward.3} parent=51 // pred_check
          %p614 = pneg %p181
        $region58: #{image_encoder_forward.3} parent=51 // pred_check_branch
          %616 = sbr.rel (%p614) target = $region60
        $region59: #{image_encoder_forward.3} parent=51 // pred_region
          %s617 = sand.u32 %s166, 1
          %s618 = scalar_lea.sflag [#allocation3], %s617
          %s619 = sand.u32 %s166, 1
          %s620 = smul.addr %s619, 64
          %s621 = scalar_lea.vmem [#allocation2], %s620
          %623 = dma.done %s618, 1024
        $region60: #{image_encoder_forward.3} parent=51 // pred_fallthru
          _
      $region52: #{image_encoder_forward.3} parent=5 // pred_fallthru
        _
    $region6: #{image_encoder_forward.3} parent=1 // loop_footer
      %s20 = sadd.s32 1, %s16
    $region7: #{image_encoder_forward.3} parent=1 // loop_footer_branch
      %15 = sbr.rel target = $region3
    $region8: #{image_encoder_forward.3} parent=1 // loop_exit
      _
    %624 = vsyncpa [#allocation3], 1
    %s625 = scalar_lea.sflag [#allocation3], 1
    %626 = vsyncpa %s625, 1

// kernel: image_encoder_forward.4
$region0: #{image_encoder_forward.4}
  #allocation0 [shape = 'u32[]', space=smem, size = 0x4, offset = 0x4, fixed_abs, tag = 'smem constant byte address 0x4 - core index']
  #allocation1 [shape = 'u32[72,128]{1,0:T(1,128)}', space=vmem, size = 0x9000, scoped, tag = 'internal scratch']
  %s0 = inlined_call_operand.vmem [shape: bf16[32,512], index: 0, kind: input, shape index: {}]
  %s1 = inlined_call_operand.vmem [shape: bf16[512,256], index: 1, kind: input, shape index: {}]
  %s2 = inlined_call_operand.vmem [shape: f32[1,256], index: 2, kind: input, shape index: {}]
  %s3 = inlined_call_operand.vmem [shape: bf16[256,128], index: 3, kind: input, shape index: {}]
  %s4 = inlined_call_operand.vmem [shape: f32[1,128], index: 4, kind: input, shape index: {}]
  %s5 = inlined_call_operand.vmem [shape: bf16[32,256], index: 5, kind: output, shape index: {0}]
  %s6 = inlined_call_operand.hbm [shape: f32[32,128], index: 6, kind: output, shape index: {1}]
  %7 = xla_tuple %s5, %s6
  %s8 = sld [smem:[#allocation0]]
  $region61: #{image_encoder_forward.4} parent=0
    _
  %s10 = ssub.s32 1, %s8
  %s11 = scalar_select 0, %s10, %s8
  $region1: #{image_encoder_forward.4} parent=0
    #allocation2 [shape = 'u8[16384]{0}', space=vmem, size = 0x4000, scoped, tag = 'output window, operand 1']
    #allocation3 [shape = 's32[2]{0}', space=sflag, size = 0x8, scoped, tag = 'scoped memory for image_encoder_forward.4']
    %12 = vsyncpa [#allocation3], 0
    %s13 = scalar_lea.sflag [#allocation3], 1
    %14 = vsyncpa %s13, 0
    loop: start=0, step=1, limit=4
    $region2: #{image_encoder_forward.4} parent=1 // loop_pre_header
      _
    $region3: #{image_encoder_forward.4} parent=1 // loop_header
      %s16 = sphi 0, %s20
      %p17 = scmp.ge.s32.totalorder %s16, 4
      %s26 = sphi 0, %s28
      %s29 = sphi 0, %s26
      %s30 = sphi 0, %s29
      %s46 = sphi 0, %s30
      %s50 = sphi 0, %s50
      %s52 = sphi 0, %s50
      %s53 = sphi 0, %s52
      %s67 = sphi 0, %s53
      %s71 = sphi 0, %s71
      %s73 = sphi 0, %s71
      %s74 = sphi 0, %s73
      %s88 = sphi 0, %s74
      %s92 = sphi 0, %s92
      %s94 = sphi 0, %s92
      %s95 = sphi 0, %s94
      %s109 = sphi 0, %s95
      %s113 = sphi 0, %s113
      %s115 = sphi 0, %s113
      %s116 = sphi 0, %s115
      %s130 = sphi 0, %s116
      %s136 = sphi 0, %s138
      %s139 = sphi 0, %s136
      %s140 = sphi 0, %s139
      %s156 = sphi 0, %s140
      %s162 = sphi 0, %s164
      %s165 = sphi 0, %s162
      %s166 = sphi 0, %s165
      %s182 = sphi 0, %s166
    $region4: #{image_encoder_forward.4} parent=1 // loop_header_branch
      %19 = sbr.rel (%p17) target = $region8
    $region5: #{image_encoder_forward.4} parent=1 // loop_body
      %s21 = ssub.s32 %s16, 1
      %s22 = ssub.s32 %s16, 2
      %s23 = sadd.s32 %s16, 1
      %s24 = ssub.s32 %s16, %s23
      %p25 = scmp.eq.s32.totalorder %s24, 0
      %s27 = sadd.s32 %s26, 1
      %s28 = scalar_select %p25, %s26, %s27
      %p31 = pneg %p25
      %p32 = scmp.eq.s32.totalorder %s16, 1
      %p33 = por %p31, %p32
      %p34 = scmp.ne.s32.totalorder %s26, %s29
      %p35 = scmp.eq.s32.totalorder %s16, 0
      %p36 = por %p34, %p35
      %p37 = scmp.ne.s32.totalorder %s26, %s29
      %p38 = scmp.eq.s32.totalorder %s21, 1
      %p39 = por %p37, %p38
      %p40 = scmp.ne.s32.totalorder %s29, %s30
      %p41 = scmp.eq.s32.totalorder %s21, 0
      %p42 = por %p40, %p41
      %p43 = scmp.ne.s32.totalorder %s29, %s30
      %p44 = scmp.eq.s32.totalorder %s22, 1
      %p45 = por %p43, %p44
      %p47 = scmp.ne.s32.totalorder %s30, %s46
      %p48 = scmp.eq.s32.totalorder %s22, 0
      %p49 = por %p47, %p48
      %s51 = sadd.s32 %s50, 1
      %p54 = scmp.eq.s32.totalorder %s16, 1
      %p55 = scmp.ne.s32.totalorder %s50, %s52
      %p56 = scmp.eq.s32.totalorder %s16, 0
      %p57 = por %p55, %p56
      %p58 = scmp.ne.s32.totalorder %s50, %s52
      %p59 = scmp.eq.s32.totalorder %s21, 1
      %p60 = por %p58, %p59
      %p61 = scmp.ne.s32.totalorder %s52, %s53
      %p62 = scmp.eq.s32.totalorder %s21, 0
      %p63 = por %p61, %p62
      %p64 = scmp.ne.s32.totalorder %s52, %s53
      %p65 = scmp.eq.s32.totalorder %s22, 1
      %p66 = por %p64, %p65
      %p68 = scmp.ne.s32.totalorder %s53, %s67
      %p69 = scmp.eq.s32.totalorder %s22, 0
      %p70 = por %p68, %p69
      %s72 = sadd.s32 %s71, 1
      %p75 = scmp.eq.s32.totalorder %s16, 1
      %p76 = scmp.ne.s32.totalorder %s71, %s73
      %p77 = scmp.eq.s32.totalorder %s16, 0
      %p78 = por %p76, %p77
      %p79 = scmp.ne.s32.totalorder %s71, %s73
      %p80 = scmp.eq.s32.totalorder %s21, 1
      %p81 = por %p79, %p80
      %p82 = scmp.ne.s32.totalorder %s73, %s74
      %p83 = scmp.eq.s32.totalorder %s21, 0
      %p84 = por %p82, %p83
      %p85 = scmp.ne.s32.totalorder %s73, %s74
      %p86 = scmp.eq.s32.totalorder %s22, 1
      %p87 = por %p85, %p86
      %p89 = scmp.ne.s32.totalorder %s74, %s88
      %p90 = scmp.eq.s32.totalorder %s22, 0
      %p91 = por %p89, %p90
      %s93 = sadd.s32 %s92, 1
      %p96 = scmp.eq.s32.totalorder %s16, 1
      %p97 = scmp.ne.s32.totalorder %s92, %s94
      %p98 = scmp.eq.s32.totalorder %s16, 0
      %p99 = por %p97, %p98
      %p100 = scmp.ne.s32.totalorder %s92, %s94
      %p101 = scmp.eq.s32.totalorder %s21, 1
      %p102 = por %p100, %p101
      %p103 = scmp.ne.s32.totalorder %s94, %s95
      %p104 = scmp.eq.s32.totalorder %s21, 0
      %p105 = por %p103, %p104
      %p106 = scmp.ne.s32.totalorder %s94, %s95
      %p107 = scmp.eq.s32.totalorder %s22, 1
      %p108 = por %p106, %p107
      %p110 = scmp.ne.s32.totalorder %s95, %s109
      %p111 = scmp.eq.s32.totalorder %s22, 0
      %p112 = por %p110, %p111
      %s114 = sadd.s32 %s113, 1
      %p117 = scmp.eq.s32.totalorder %s16, 1
      %p118 = scmp.ne.s32.totalorder %s113, %s115
      %p119 = scmp.eq.s32.totalorder %s16, 0
      %p120 = por %p118, %p119
      %p121 = scmp.ne.s32.totalorder %s113, %s115
      %p122 = scmp.eq.s32.totalorder %s21, 1
      %p123 = por %p121, %p122
      %p124 = scmp.ne.s32.totalorder %s115, %s116
      %p125 = scmp.eq.s32.totalorder %s21, 0
      %p126 = por %p124, %p125
      %p127 = scmp.ne.s32.totalorder %s115, %s116
      %p128 = scmp.eq.s32.totalorder %s22, 1
      %p129 = por %p127, %p128
      %p131 = scmp.ne.s32.totalorder %s116, %s130
      %p132 = scmp.eq.s32.totalorder %s22, 0
      %p133 = por %p131, %p132
      %s134 = ssub.s32 %s16, %s23
      %p135 = scmp.eq.s32.totalorder %s134, 0
      %s137 = sadd.s32 %s136, 1
      %s138 = scalar_select %p135, %s136, %s137
      %p141 = pneg %p135
      %p142 = scmp.eq.s32.totalorder %s16, 1
      %p143 = por %p141, %p142
      %p144 = scmp.ne.s32.totalorder %s136, %s139
      %p145 = scmp.eq.s32.totalorder %s16, 0
      %p146 = por %p144, %p145
      %p147 = scmp.ne.s32.totalorder %s136, %s139
      %p148 = scmp.eq.s32.totalorder %s21, 1
      %p149 = por %p147, %p148
      %p150 = scmp.ne.s32.totalorder %s139, %s140
      %p151 = scmp.eq.s32.totalorder %s21, 0
      %p152 = por %p150, %p151
      %p153 = scmp.ne.s32.totalorder %s139, %s140
      %p154 = scmp.eq.s32.totalorder %s22, 1
      %p155 = por %p153, %p154
      %p157 = scmp.ne.s32.totalorder %s140, %s156
      %p158 = scmp.eq.s32.totalorder %s22, 0
      %p159 = por %p157, %p158
      %s160 = ssub.s32 %s16, %s23
      %p161 = scmp.eq.s32.totalorder %s160, 0
      %s163 = sadd.s32 %s162, 1
      %s164 = scalar_select %p161, %s162, %s163
      %p167 = pneg %p161
      %p168 = scmp.eq.s32.totalorder %s16, 1
      %p169 = por %p167, %p168
      %p170 = scmp.ne.s32.totalorder %s162, %s165
      %p171 = scmp.eq.s32.totalorder %s16, 0
      %p172 = por %p170, %p171
      %p173 = scmp.ne.s32.totalorder %s162, %s165
      %p174 = scmp.eq.s32.totalorder %s21, 1
      %p175 = por %p173, %p174
      %p176 = scmp.ne.s32.totalorder %s165, %s166
      %p177 = scmp.eq.s32.totalorder %s21, 0
      %p178 = por %p176, %p177
      %p179 = scmp.ne.s32.totalorder %s165, %s166
      %p180 = scmp.eq.s32.totalorder %s22, 1
      %p181 = por %p179, %p180
      %p183 = scmp.ne.s32.totalorder %s166, %s182
      %p184 = scmp.eq.s32.totalorder %s22, 0
      %p185 = por %p183, %p184
      %p186 = scmp.le.s32.totalorder 1, %s16
      %p187 = scmp.lt.s32.totalorder %s16, 3
      %p188 = pnand %p186, %p187
      %p189 = pneg %p188
      // Predicated region
      $region9: #{image_encoder_forward.4} parent=5 // pred_check
        _
      $region10: #{image_encoder_forward.4} parent=5 // pred_check_branch
        %191 = sbr.rel (%p188) target = $region12
      $region11: #{image_encoder_forward.4} parent=5 // pred_region
        %s192 = ssub.s32 %s16, 1
        // Predicated region
        $region13: #{image_encoder_forward.4} parent=11 // pred_check
          %p193 = pneg %p63
        $region14: #{image_encoder_forward.4} parent=11 // pred_check_branch
          %195 = sbr.rel (%p193) target = $region16
        $region15: #{image_encoder_forward.4} parent=11 // pred_region
          _
        $region16: #{image_encoder_forward.4} parent=11 // pred_fallthru
          _
        // Predicated region
        $region17: #{image_encoder_forward.4} parent=11 // pred_check
          %p196 = pneg %p84
        $region18: #{image_encoder_forward.4} parent=11 // pred_check_branch
          %198 = sbr.rel (%p196) target = $region20
        $region19: #{image_encoder_forward.4} parent=11 // pred_region
          _
        $region20: #{image_encoder_forward.4} parent=11 // pred_fallthru
          _
        // Predicated region
        $region21: #{image_encoder_forward.4} parent=11 // pred_check
          %p199 = pneg %p105
        $region22: #{image_encoder_forward.4} parent=11 // pred_check_branch
          %201 = sbr.rel (%p199) target = $region24
        $region23: #{image_encoder_forward.4} parent=11 // pred_region
          _
        $region24: #{image_encoder_forward.4} parent=11 // pred_fallthru
          _
        // Predicated region
        $region25: #{image_encoder_forward.4} parent=11 // pred_check
          %p202 = pneg %p126
        $region26: #{image_encoder_forward.4} parent=11 // pred_check_branch
          %204 = sbr.rel (%p202) target = $region28
        $region27: #{image_encoder_forward.4} parent=11 // pred_region
          _
        $region28: #{image_encoder_forward.4} parent=11 // pred_fallthru
          _
      $region12: #{image_encoder_forward.4} parent=5 // pred_fallthru
        _
      %p205 = scmp.lt.s32.totalorder %s16, 2
      // Predicated region
      $region29: #{image_encoder_forward.4} parent=5 // pred_check
        %p206 = pneg %p205
      $region30: #{image_encoder_forward.4} parent=5 // pred_check_branch
        %208 = sbr.rel (%p206) target = $region32
      $region31: #{image_encoder_forward.4} parent=5 // pred_region
        // Predicated region
        $region33: #{image_encoder_forward.4} parent=31 // pred_check
          %p209 = pneg %p36
        $region34: #{image_encoder_forward.4} parent=31 // pred_check_branch
          %211 = sbr.rel (%p209) target = $region36
        $region35: #{image_encoder_forward.4} parent=31 // pred_region
          %s212 = smul.u32 2, %s16
          %p213 = scmp.lt.s32.totalorder %s212, 3
          %s214 = scalar_select %p213, %s212, 3
          %s215 = smul.addr %s214, 4
          %s216 = smul.addr %s215, 4
          %s217 = scalar_lea.vmem %s0, %s216
          %s218 = smul.u32 2, %s16
        $region36: #{image_encoder_forward.4} parent=31 // pred_fallthru
          _
      $region32: #{image_encoder_forward.4} parent=5 // pred_fallthru
        _
      %p219 = scmp.le.s32.totalorder 1, %s16
      %p220 = scmp.lt.s32.totalorder %s16, 3
      %p221 = pnand %p219, %p220
      %p222 = pneg %p221
      // Predicated region
      $region37: #{image_encoder_forward.4} parent=5 // pred_check
        _
      $region38: #{image_encoder_forward.4} parent=5 // pred_check_branch
        %224 = sbr.rel (%p221) target = $region40
      $region39: #{image_encoder_forward.4} parent=5 // pred_region
        %s225 = ssub.s32 %s16, 1
        %s226 = smul.u32 2, %s21
        %p227 = scmp.lt.s32.totalorder %s226, 3
        %s228 = scalar_select %p227, %s226, 3
        %s229 = smul.addr %s228, 4
        %s230 = smul.addr %s229, 4
        %s231 = scalar_lea.vmem %s0, %s230
        %p232 = pneg %p42
        %p233 = pneg %p39
        %p234 = pneg %p63
        %p235 = pneg %p60
        %p236 = pneg %p84
        %p237 = pneg %p81
        %p238 = pneg %p105
        %p239 = pneg %p102
        %p240 = pneg %p126
        %p241 = pneg %p123
        %p242 = pneg %p152
        %p243 = pneg %p149
        %s244 = smul.u32 2, %s21
        %p245 = scmp.lt.s32.totalorder %s244, 3
        %s246 = scalar_select %p245, %s244, 3
        %s247 = smul.addr %s246, 2
        %s248 = smul.addr %s247, 4
        %s249 = scalar_lea.vmem %s5, %s248
        %p250 = pneg %p178
        %p251 = pneg %p175
        %s252 = sand.u32 %s165, 1
        %s253 = scalar_lea.sflag [#allocation3], %s252
        %s254 = sand.u32 %s165, 1
        %s255 = smul.addr %s254, 16
        %s256 = scalar_lea.vmem [#allocation2], %s255
        %s257 = smul.u32 2, %s21
        %p258 = scmp.lt.s32.totalorder %s257, 3
        %s259 = scalar_select %p258, %s257, 3
        %s260 = smul.addr %s259, 4
        %s261 = smul.addr %s260, 4
        %s262 = scalar_lea.vmem %s0, %s261
        %s263 = smul.u32 2, %s21
        %s264 = smul.u32 2, %s21
        %p265 = scmp.lt.s32.totalorder %s264, 3
        %s266 = scalar_select %p265, %s264, 3
        %s267 = smul.addr %s266, 2
        %s268 = smul.addr %s267, 4
        %s269 = scalar_lea.vmem %s5, %s268
        %s270 = smul.u32 2, %s21
        %s271 = smul.u32 2, %s21
        %v272 = vld [vmem:[%s262] sm:$0xff]
        %v273 = vld [vmem:[%s262 + $0x8] sm:$0xff]
        %v274 = vld [vmem:[%s262 + $0x10] sm:$0xff]
        %v275 = vld [vmem:[%s262 + $0x18] sm:$0xff]
        %v276 = vld [vmem:[%s1] sm:$0xff]
        %v277 = vld [vmem:[%s1 + $0x8] sm:$0xff]
        %v278 = vld [vmem:[%s1 + $0x10] sm:$0xff]
        %v279 = vld [vmem:[%s1 + $0x18] sm:$0xff]
        %v280 = vld [vmem:[%s1 + $0x20] sm:$0xff]
        %v281 = vld [vmem:[%s1 + $0x28] sm:$0xff]
        %v282 = vld [vmem:[%s1 + $0x30] sm:$0xff]
        %v283 = vld [vmem:[%s1 + $0x38] sm:$0xff]
        %v284 = vld [vmem:[%s1 + $0x40] sm:$0xff]
        %v285 = vld [vmem:[%s1 + $0x48] sm:$0xff]
        %v286 = vld [vmem:[%s1 + $0x50] sm:$0xff]
        %v287 = vld [vmem:[%s1 + $0x58] sm:$0xff]
        %v288 = vld [vmem:[%s1 + $0x60] sm:$0xff]
        %v289 = vld [vmem:[%s1 + $0x68] sm:$0xff]
        %v290 = vld [vmem:[%s1 + $0x70] sm:$0xff]
        %v291 = vld [vmem:[%s1 + $0x78] sm:$0xff]
        %v292 = vld [vmem:[%s1 + $0x80] sm:$0xff]
        %v293 = vld [vmem:[%s1 + $0x88] sm:$0xff]
        %v294 = vld [vmem:[%s1 + $0x90] sm:$0xff]
        %v295 = vld [vmem:[%s1 + $0x98] sm:$0xff]
        %v296 = vld [vmem:[%s1 + $0xa0] sm:$0xff]
        %v297 = vld [vmem:[%s1 + $0xa8] sm:$0xff]
        %v298 = vld [vmem:[%s1 + $0xb0] sm:$0xff]
        %v299 = vld [vmem:[%s1 + $0xb8] sm:$0xff]
        %v300 = vld [vmem:[%s1 + $0xc0] sm:$0xff]
        %v301 = vld [vmem:[%s1 + $0xc8] sm:$0xff]
        %v302 = vld [vmem:[%s1 + $0xd0] sm:$0xff]
        %v303 = vld [vmem:[%s1 + $0xd8] sm:$0xff]
        %v304 = vld [vmem:[%s1 + $0xe0] sm:$0xff]
        %v305 = vld [vmem:[%s1 + $0xe8] sm:$0xff]
        %v306 = vld [vmem:[%s1 + $0xf0] sm:$0xff]
        %v307 = vld [vmem:[%s1 + $0xf8] sm:$0xff]
        %v308 = vld [vmem:[%s1 + $0x100] sm:$0xff]
        %v309 = vld [vmem:[%s1 + $0x108] sm:$0xff]
        %v310 = vld [vmem:[%s1 + $0x110] sm:$0xff]
        %v311 = vld [vmem:[%s1 + $0x118] sm:$0xff]
        %v312 = vld [vmem:[%s1 + $0x120] sm:$0xff]
        %v313 = vld [vmem:[%s1 + $0x128] sm:$0xff]
        %v314 = vld [vmem:[%s1 + $0x130] sm:$0xff]
        %v315 = vld [vmem:[%s1 + $0x138] sm:$0xff]
        %v316 = vld [vmem:[%s1 + $0x140] sm:$0xff]
        %v317 = vld [vmem:[%s1 + $0x148] sm:$0xff]
        %v318 = vld [vmem:[%s1 + $0x150] sm:$0xff]
        %v319 = vld [vmem:[%s1 + $0x158] sm:$0xff]
        %v320 = vld [vmem:[%s1 + $0x160] sm:$0xff]
        %v321 = vld [vmem:[%s1 + $0x168] sm:$0xff]
        %v322 = vld [vmem:[%s1 + $0x170] sm:$0xff]
        %v323 = vld [vmem:[%s1 + $0x178] sm:$0xff]
        %v324 = vld [vmem:[%s1 + $0x180] sm:$0xff]
        %v325 = vld [vmem:[%s1 + $0x188] sm:$0xff]
        %v326 = vld [vmem:[%s1 + $0x190] sm:$0xff]
        %v327 = vld [vmem:[%s1 + $0x198] sm:$0xff]
        %v328 = vld [vmem:[%s1 + $0x1a0] sm:$0xff]
        %v329 = vld [vmem:[%s1 + $0x1a8] sm:$0xff]
        %v330 = vld [vmem:[%s1 + $0x1b0] sm:$0xff]
        %v331 = vld [vmem:[%s1 + $0x1b8] sm:$0xff]
        %v332 = vld [vmem:[%s1 + $0x1c0] sm:$0xff]
        %v333 = vld [vmem:[%s1 + $0x1c8] sm:$0xff]
        %v334 = vld [vmem:[%s1 + $0x1d0] sm:$0xff]
        %v335 = vld [vmem:[%s1 + $0x1d8] sm:$0xff]
        %v336 = vld [vmem:[%s1 + $0x1e0] sm:$0xff]
        %v337 = vld [vmem:[%s1 + $0x1e8] sm:$0xff]
        %v338 = vld [vmem:[%s1 + $0x1f0] sm:$0xff]
        %v339 = vld [vmem:[%s1 + $0x1f8] sm:$0xff]
        %v340 = vld [vmem:[%s2] sm:$0x3]
        %v342 = vperm.slane %v340, 0
        %v343 = vperm.slane %v340, 1
        %v350 = vunpack.c.l.b16 %v272
        %v351 = vunpack.c.h.b16 %v272
        %v352 = vunpack.c.l.b16 %v273
        %v353 = vunpack.c.h.b16 %v273
        %v354 = vunpack.c.l.b16 %v274
        %v355 = vunpack.c.h.b16 %v274
        %v356 = vunpack.c.l.b16 %v275
        %v357 = vunpack.c.h.b16 %v275
        %v358 = vpack.c.b16 %v354, %v350
        %v359 = vpack.c.b16 %v355, %v351
        %v360 = vpack.c.b16 %v356, %v352
        %v361 = vpack.c.b16 %v357, %v353
        %v430 = vunpack.c.l.b16 %v276
        %v431 = vunpack.c.h.b16 %v276
        %v432 = vunpack.c.l.b16 %v277
        %v433 = vunpack.c.h.b16 %v277
        %v434 = vunpack.c.l.b16 %v278
        %v435 = vunpack.c.h.b16 %v278
        %v436 = vunpack.c.l.b16 %v279
        %v437 = vunpack.c.h.b16 %v279
        %v438 = vunpack.c.l.b16 %v280
        %v439 = vunpack.c.h.b16 %v280
        %v440 = vunpack.c.l.b16 %v281
        %v441 = vunpack.c.h.b16 %v281
        %v442 = vunpack.c.l.b16 %v282
        %v443 = vunpack.c.h.b16 %v282
        %v444 = vunpack.c.l.b16 %v283
        %v445 = vunpack.c.h.b16 %v283
        %v446 = vunpack.c.l.b16 %v284
        %v447 = vunpack.c.h.b16 %v284
        %v448 = vunpack.c.l.b16 %v285
        %v449 = vunpack.c.h.b16 %v285
        %v450 = vunpack.c.l.b16 %v286
        %v451 = vunpack.c.h.b16 %v286
        %v452 = vunpack.c.l.b16 %v287
        %v453 = vunpack.c.h.b16 %v287
        %v454 = vunpack.c.l.b16 %v288
        %v455 = vunpack.c.h.b16 %v288
        %v456 = vunpack.c.l.b16 %v289
        %v457 = vunpack.c.h.b16 %v289
        %v458 = vunpack.c.l.b16 %v290
        %v459 = vunpack.c.h.b16 %v290
        %v460 = vunpack.c.l.b16 %v291
        %v461 = vunpack.c.h.b16 %v291
        %v462 = vunpack.c.l.b16 %v292
        %v463 = vunpack.c.h.b16 %v292
        %v464 = vunpack.c.l.b16 %v293
        %v465 = vunpack.c.h.b16 %v293
        %v466 = vunpack.c.l.b16 %v294
        %v467 = vunpack.c.h.b16 %v294
        %v468 = vunpack.c.l.b16 %v295
        %v469 = vunpack.c.h.b16 %v295
        %v470 = vunpack.c.l.b16 %v296
        %v471 = vunpack.c.h.b16 %v296
        %v472 = vunpack.c.l.b16 %v297
        %v473 = vunpack.c.h.b16 %v297
        %v474 = vunpack.c.l.b16 %v298
        %v475 = vunpack.c.h.b16 %v298
        %v476 = vunpack.c.l.b16 %v299
        %v477 = vunpack.c.h.b16 %v299
        %v478 = vunpack.c.l.b16 %v300
        %v479 = vunpack.c.h.b16 %v300
        %v480 = vunpack.c.l.b16 %v301
        %v481 = vunpack.c.h.b16 %v301
        %v482 = vunpack.c.l.b16 %v302
        %v483 = vunpack.c.h.b16 %v302
        %v484 = vunpack.c.l.b16 %v303
        %v485 = vunpack.c.h.b16 %v303
        %v486 = vunpack.c.l.b16 %v304
        %v487 = vunpack.c.h.b16 %v304
        %v488 = vunpack.c.l.b16 %v305
        %v489 = vunpack.c.h.b16 %v305
        %v490 = vunpack.c.l.b16 %v306
        %v491 = vunpack.c.h.b16 %v306
        %v492 = vunpack.c.l.b16 %v307
        %v493 = vunpack.c.h.b16 %v307
        %v494 = vunpack.c.l.b16 %v308
        %v495 = vunpack.c.h.b16 %v308
        %v496 = vunpack.c.l.b16 %v309
        %v497 = vunpack.c.h.b16 %v309
        %v498 = vunpack.c.l.b16 %v310
        %v499 = vunpack.c.h.b16 %v310
        %v500 = vunpack.c.l.b16 %v311
        %v501 = vunpack.c.h.b16 %v311
        %v502 = vunpack.c.l.b16 %v312
        %v503 = vunpack.c.h.b16 %v312
        %v504 = vunpack.c.l.b16 %v313
        %v505 = vunpack.c.h.b16 %v313
        %v506 = vunpack.c.l.b16 %v314
        %v507 = vunpack.c.h.b16 %v314
        %v508 = vunpack.c.l.b16 %v315
        %v509 = vunpack.c.h.b16 %v315
        %v510 = vunpack.c.l.b16 %v316
        %v511 = vunpack.c.h.b16 %v316
        %v512 = vunpack.c.l.b16 %v317
        %v513 = vunpack.c.h.b16 %v317
        %v514 = vunpack.c.l.b16 %v318
        %v515 = vunpack.c.h.b16 %v318
        %v516 = vunpack.c.l.b16 %v319
        %v517 = vunpack.c.h.b16 %v319
        %v518 = vunpack.c.l.b16 %v320
        %v519 = vunpack.c.h.b16 %v320
        %v520 = vunpack.c.l.b16 %v321
        %v521 = vunpack.c.h.b16 %v321
        %v522 = vunpack.c.l.b16 %v322
        %v523 = vunpack.c.h.b16 %v322
        %v524 = vunpack.c.l.b16 %v323
        %v525 = vunpack.c.h.b16 %v323
        %v526 = vunpack.c.l.b16 %v324
        %v527 = vunpack.c.h.b16 %v324
        %v528 = vunpack.c.l.b16 %v325
        %v529 = vunpack.c.h.b16 %v325
        %v530 = vunpack.c.l.b16 %v326
        %v531 = vunpack.c.h.b16 %v326
        %v532 = vunpack.c.l.b16 %v327
        %v533 = vunpack.c.h.b16 %v327
        %v534 = vunpack.c.l.b16 %v328
        %v535 = vunpack.c.h.b16 %v328
        %v536 = vunpack.c.l.b16 %v329
        %v537 = vunpack.c.h.b16 %v329
        %v538 = vunpack.c.l.b16 %v330
        %v539 = vunpack.c.h.b16 %v330
        %v540 = vunpack.c.l.b16 %v331
        %v541 = vunpack.c.h.b16 %v331
        %v542 = vunpack.c.l.b16 %v332
        %v543 = vunpack.c.h.b16 %v332
        %v544 = vunpack.c.l.b16 %v333
        %v545 = vunpack.c.h.b16 %v333
        %v546 = vunpack.c.l.b16 %v334
        %v547 = vunpack.c.h.b16 %v334
        %v548 = vunpack.c.l.b16 %v335
        %v549 = vunpack.c.h.b16 %v335
        %v550 = vunpack.c.l.b16 %v336
        %v551 = vunpack.c.h.b16 %v336
        %v552 = vunpack.c.l.b16 %v337
        %v553 = vunpack.c.h.b16 %v337
        %v554 = vunpack.c.l.b16 %v338
        %v555 = vunpack.c.h.b16 %v338
        %v556 = vunpack.c.l.b16 %v339
        %v557 = vunpack.c.h.b16 %v339
        %v558 = vpack.c.b16 %v432, %v430
        %v559 = vpack.c.b16 %v433, %v431
        %v560 = vpack.c.b16 %v436, %v434
        %v561 = vpack.c.b16 %v437, %v435
        %v562 = vpack.c.b16 %v440, %v438
        %v563 = vpack.c.b16 %v441, %v439
        %v564 = vpack.c.b16 %v444, %v442
        %v565 = vpack.c.b16 %v445, %v443
        %v566 = vpack.c.b16 %v448, %v446
        %v567 = vpack.c.b16 %v449, %v447
        %v568 = vpack.c.b16 %v452, %v450
        %v569 = vpack.c.b16 %v453, %v451
        %v570 = vpack.c.b16 %v456, %v454
        %v571 = vpack.c.b16 %v457, %v455
        %v572 = vpack.c.b16 %v460, %v458
        %v573 = vpack.c.b16 %v461, %v459
        %v574 = vpack.c.b16 %v464, %v462
        %v575 = vpack.c.b16 %v465, %v463
        %v576 = vpack.c.b16 %v468, %v466
        %v577 = vpack.c.b16 %v469, %v467
        %v578 = vpack.c.b16 %v472, %v470
        %v579 = vpack.c.b16 %v473, %v471
        %v580 = vpack.c.b16 %v476, %v474
        %v581 = vpack.c.b16 %v477, %v475
        %v582 = vpack.c.b16 %v480, %v478
        %v583 = vpack.c.b16 %v481, %v479
        %v584 = vpack.c.b16 %v484, %v482
        %v585 = vpack.c.b16 %v485, %v483
        %v586 = vpack.c.b16 %v488, %v486
        %v587 = vpack.c.b16 %v489, %v487
        %v588 = vpack.c.b16 %v492, %v490
        %v589 = vpack.c.b16 %v493, %v491
        %v590 = vpack.c.b16 %v496, %v494
        %v591 = vpack.c.b16 %v497, %v495
        %v592 = vpack.c.b16 %v500, %v498
        %v593 = vpack.c.b16 %v501, %v499
        %v594 = vpack.c.b16 %v504, %v502
        %v595 = vpack.c.b16 %v505, %v503
        %v596 = vpack.c.b16 %v508, %v506
        %v597 = vpack.c.b16 %v509, %v507
        %v598 = vpack.c.b16 %v512, %v510
        %v599 = vpack.c.b16 %v513, %v511
        %v600 = vpack.c.b16 %v516, %v514
        %v601 = vpack.c.b16 %v517, %v515
        %v602 = vpack.c.b16 %v520, %v518
        %v603 = vpack.c.b16 %v521, %v519
        %v604 = vpack.c.b16 %v524, %v522
        %v605 = vpack.c.b16 %v525, %v523
        %v606 = vpack.c.b16 %v528, %v526
        %v607 = vpack.c.b16 %v529, %v527
        %v608 = vpack.c.b16 %v532, %v530
        %v609 = vpack.c.b16 %v533, %v531
        %v610 = vpack.c.b16 %v536, %v534
        %v611 = vpack.c.b16 %v537, %v535
        %v612 = vpack.c.b16 %v540, %v538
        %v613 = vpack.c.b16 %v541, %v539
        %v614 = vpack.c.b16 %v544, %v542
        %v615 = vpack.c.b16 %v545, %v543
        %v616 = vpack.c.b16 %v548, %v546
        %v617 = vpack.c.b16 %v549, %v547
        %v618 = vpack.c.b16 %v552, %v550
        %v619 = vpack.c.b16 %v553, %v551
        %v620 = vpack.c.b16 %v556, %v554
        %v621 = vpack.c.b16 %v557, %v555
        %686 = vmatpush.bf16.msra.mxu0 %v572
        %687 = vmatpush.bf16.msra.mxu0 %v570
        %688 = vmatpush.bf16.msra.mxu0 %v568
        %689 = vmatpush.bf16.msra.mxu0 %v566
        %690 = vmatpush.bf16.msra.mxu0 %v564
        %691 = vmatpush.bf16.msra.mxu0 %v562
        %692 = vmatpush.bf16.msra.mxu0 %v560
        %693 = vmatpush.bf16.msra.mxu0 %v558
        %694 = vmatmul.bf16.gmra.mxu0 %v358
        %v695 = vpop.f32.mrf.mxu0
        %v696 = vadd.f32 %v342, %v695
        %v697 = vpop.f32.mrf.mxu0
        %v698 = vadd.f32 %v342, %v697
        %699 = vdwg.mxu0
        %700 = vmatpush.bf16.msra.mxu0 %v588
        %701 = vmatpush.bf16.msra.mxu0 %v586
        %702 = vmatpush.bf16.msra.mxu0 %v584
        %703 = vmatpush.bf16.msra.mxu0 %v582
        %704 = vmatpush.bf16.msra.mxu0 %v580
        %705 = vmatpush.bf16.msra.mxu0 %v578
        %706 = vmatpush.bf16.msra.mxu0 %v576
        %707 = vmatpush.bf16.msra.mxu0 %v574
        %708 = vmatmul.bf16.gmra.mxu0 %v359
        %v709 = vpop.f32.mrf.mxu0
        %v710 = vadd.f32 %v696, %v709
        %v711 = vpop.f32.mrf.mxu0
        %v712 = vadd.f32 %v698, %v711
        %713 = vdwg.mxu0
        %714 = vmatpush.bf16.msra.mxu0 %v604
        %715 = vmatpush.bf16.msra.mxu0 %v602
        %716 = vmatpush.bf16.msra.mxu0 %v600
        %717 = vmatpush.bf16.msra.mxu0 %v598
        %718 = vmatpush.bf16.msra.mxu0 %v596
        %719 = vmatpush.bf16.msra.mxu0 %v594
        %720 = vmatpush.bf16.msra.mxu0 %v592
        %721 = vmatpush.bf16.msra.mxu0 %v590
        %722 = vmatmul.bf16.gmra.mxu0 %v360
        %v723 = vpop.f32.mrf.mxu0
        %v724 = vadd.f32 %v710, %v723
        %v725 = vpop.f32.mrf.mxu0
        %v726 = vadd.f32 %v712, %v725
        %727 = vdwg.mxu0
        %728 = vmatpush.bf16.msra.mxu0 %v620
        %729 = vmatpush.bf16.msra.mxu0 %v618
        %730 = vmatpush.bf16.msra.mxu0 %v616
        %731 = vmatpush.bf16.msra.mxu0 %v614
        %732 = vmatpush.bf16.msra.mxu0 %v612
        %733 = vmatpush.bf16.msra.mxu0 %v610
        %734 = vmatpush.bf16.msra.mxu0 %v608
        %735 = vmatpush.bf16.msra.mxu0 %v606
        %736 = vmatmul.bf16.gmra.mxu0 %v361
        %v737 = vpop.f32.mrf.mxu0
        %v738 = vadd.f32 %v724, %v737
        %v739 = vpop.f32.mrf.mxu0
        %v740 = vadd.f32 %v726, %v739
        %741 = vdwg.mxu0
        %742 = vmatpush.bf16.msra.mxu0 %v573
        %743 = vmatpush.bf16.msra.mxu0 %v571
        %744 = vmatpush.bf16.msra.mxu0 %v569
        %745 = vmatpush.bf16.msra.mxu0 %v567
        %746 = vmatpush.bf16.msra.mxu0 %v565
        %747 = vmatpush.bf16.msra.mxu0 %v563
        %748 = vmatpush.bf16.msra.mxu0 %v561
        %749 = vmatpush.bf16.msra.mxu0 %v559
        %750 = vmatmul.bf16.gmra.mxu0 %v358
        %v751 = vpop.f32.mrf.mxu0
        %v752 = vadd.f32 %v343, %v751
        %v753 = vpop.f32.mrf.mxu0
        %v754 = vadd.f32 %v343, %v753
        %755 = vdwg.mxu0
        %756 = vmatpush.bf16.msra.mxu0 %v589
        %757 = vmatpush.bf16.msra.mxu0 %v587
        %758 = vmatpush.bf16.msra.mxu0 %v585
        %759 = vmatpush.bf16.msra.mxu0 %v583
        %760 = vmatpush.bf16.msra.mxu0 %v581
        %761 = vmatpush.bf16.msra.mxu0 %v579
        %762 = vmatpush.bf16.msra.mxu0 %v577
        %763 = vmatpush.bf16.msra.mxu0 %v575
        %764 = vmatmul.bf16.gmra.mxu0 %v359
        %v765 = vpop.f32.mrf.mxu0
        %v766 = vadd.f32 %v752, %v765
        %v767 = vpop.f32.mrf.mxu0
        %v768 = vadd.f32 %v754, %v767
        %769 = vdwg.mxu0
        %770 = vmatpush.bf16.msra.mxu0 %v605
        %771 = vmatpush.bf16.msra.mxu0 %v603
        %772 = vmatpush.bf16.msra.mxu0 %v601
        %773 = vmatpush.bf16.msra.mxu0 %v599
        %774 = vmatpush.bf16.msra.mxu0 %v597
        %775 = vmatpush.bf16.msra.mxu0 %v595
        %776 = vmatpush.bf16.msra.mxu0 %v593
        %777 = vmatpush.bf16.msra.mxu0 %v591
        %778 = vmatmul.bf16.gmra.mxu0 %v360
        %v779 = vpop.f32.mrf.mxu0
        %v780 = vadd.f32 %v766, %v779
        %v781 = vpop.f32.mrf.mxu0
        %v782 = vadd.f32 %v768, %v781
        %783 = vdwg.mxu0
        %784 = vmatpush.bf16.msra.mxu0 %v621
        %785 = vmatpush.bf16.msra.mxu0 %v619
        %786 = vmatpush.bf16.msra.mxu0 %v617
        %787 = vmatpush.bf16.msra.mxu0 %v615
        %788 = vmatpush.bf16.msra.mxu0 %v613
        %789 = vmatpush.bf16.msra.mxu0 %v611
        %790 = vmatpush.bf16.msra.mxu0 %v609
        %791 = vmatpush.bf16.msra.mxu0 %v607
        %792 = vmatmul.bf16.gmra.mxu0 %v361
        %v793 = vpop.f32.mrf.mxu0
        %v794 = vadd.f32 %v780, %v793
        %v795 = vpop.f32.mrf.mxu0
        %v796 = vadd.f32 %v782, %v795
        %797 = vdwg.mxu0
        %v798 = vmul.f32 %v738, %v738
        %v799 = vmul.f32 %v794, %v794
        %v800 = vmul.f32 %v740, %v740
        %v801 = vmul.f32 %v796, %v796
        %v802 = vmul.f32 %v738, %v798
        %v803 = vmul.f32 %v794, %v799
        %v804 = vmul.f32 %v740, %v800
        %v805 = vmul.f32 %v796, %v801
        %v806 = vmul.f32 %v802, 0.044715
        %v807 = vmul.f32 %v803, 0.044715
        %v808 = vmul.f32 %v804, 0.044715
        %v809 = vmul.f32 %v805, 0.044715
        %v810 = vadd.f32 %v738, %v806
        %v811 = vadd.f32 %v794, %v807
        %v812 = vadd.f32 %v740, %v808
        %v813 = vadd.f32 %v796, %v809
        %v814 = vmul.f32 %v810, 0.7978846
        %v815 = vmul.f32 %v811, 0.7978846
        %v816 = vmul.f32 %v812, 0.7978846
        %v817 = vmul.f32 %v813, 0.7978846
        %v818 = vtanh.pop %v814
        %v819 = vtanh.pop %v815
        %v820 = vtanh.pop %v816
        %v821 = vtanh.pop %v817
        %v822 = vadd.f32 %v818, 1.0
        %v823 = vadd.f32 %v819, 1.0
        %v824 = vadd.f32 %v820, 1.0
        %v825 = vadd.f32 %v821, 1.0
        %v826 = vmul.f32 %v822, 0.5
        %v827 = vmul.f32 %v823, 0.5
        %v828 = vmul.f32 %v824, 0.5
        %v829 = vmul.f32 %v825, 0.5
        %v830 = vmul.f32 %v738, %v826
        %v831 = vmul.f32 %v794, %v827
        %v832 = vmul.f32 %v740, %v828
        %v833 = vmul.f32 %v796, %v829
        %v834 = vpack.c.bf16 %v831, %v830
        %v835 = vpack.c.bf16 %v833, %v832
        %836 = vst [vmem:[%s269] sm:$0xff] %v834
        %837 = vst [vmem:[%s269 + $0x8] sm:$0xff] %v835
        %v838 = vld [vmem:[%s3] sm:$0xf]
        %v839 = vld [vmem:[%s3 + $0x4] sm:$0xf]
        %v840 = vld [vmem:[%s3 + $0x8] sm:$0xf]
        %v841 = vld [vmem:[%s3 + $0xc] sm:$0xf]
        %v842 = vld [vmem:[%s3 + $0x10] sm:$0xf]
        %v843 = vld [vmem:[%s3 + $0x14] sm:$0xf]
        %v844 = vld [vmem:[%s3 + $0x18] sm:$0xf]
        %v845 = vld [vmem:[%s3 + $0x1c] sm:$0xf]
        %v846 = vld [vmem:[%s3 + $0x20] sm:$0xf]
        %v847 = vld [vmem:[%s3 + $0x24] sm:$0xf]
        %v848 = vld [vmem:[%s3 + $0x28] sm:$0xf]
        %v849 = vld [vmem:[%s3 + $0x2c] sm:$0xf]
        %v850 = vld [vmem:[%s3 + $0x30] sm:$0xf]
        %v851 = vld [vmem:[%s3 + $0x34] sm:$0xf]
        %v852 = vld [vmem:[%s3 + $0x38] sm:$0xf]
        %v853 = vld [vmem:[%s3 + $0x3c] sm:$0xf]
        %v854 = vld [vmem:[%s3 + $0x40] sm:$0xf]
        %v855 = vld [vmem:[%s3 + $0x44] sm:$0xf]
        %v856 = vld [vmem:[%s3 + $0x48] sm:$0xf]
        %v857 = vld [vmem:[%s3 + $0x4c] sm:$0xf]
        %v858 = vld [vmem:[%s3 + $0x50] sm:$0xf]
        %v859 = vld [vmem:[%s3 + $0x54] sm:$0xf]
        %v860 = vld [vmem:[%s3 + $0x58] sm:$0xf]
        %v861 = vld [vmem:[%s3 + $0x5c] sm:$0xf]
        %v862 = vld [vmem:[%s3 + $0x60] sm:$0xf]
        %v863 = vld [vmem:[%s3 + $0x64] sm:$0xf]
        %v864 = vld [vmem:[%s3 + $0x68] sm:$0xf]
        %v865 = vld [vmem:[%s3 + $0x6c] sm:$0xf]
        %v866 = vld [vmem:[%s3 + $0x70] sm:$0xf]
        %v867 = vld [vmem:[%s3 + $0x74] sm:$0xf]
        %v868 = vld [vmem:[%s3 + $0x78] sm:$0xf]
        %v869 = vld [vmem:[%s3 + $0x7c] sm:$0xf]
        %v870 = vld [vmem:[%s4] sm:$0x1]
        %v872 = vperm.slane %v870, 0
        %v876 = vunpack.c.l.b16 %v834
        %v877 = vunpack.c.h.b16 %v834
        %v878 = vunpack.c.l.b16 %v835
        %v879 = vunpack.c.h.b16 %v835
        %v880 = vpack.c.b16 %v878, %v876
        %v881 = vpack.c.b16 %v879, %v877
        %v916 = vunpack.c.l.b16 %v838
        %v917 = vunpack.c.l.b16 %v839
        %v918 = vunpack.c.l.b16 %v840
        %v919 = vunpack.c.l.b16 %v841
        %v920 = vunpack.c.l.b16 %v842
        %v921 = vunpack.c.l.b16 %v843
        %v922 = vunpack.c.l.b16 %v844
        %v923 = vunpack.c.l.b16 %v845
        %v924 = vunpack.c.l.b16 %v846
        %v925 = vunpack.c.l.b16 %v847
        %v926 = vunpack.c.l.b16 %v848
        %v927 = vunpack.c.l.b16 %v849
        %v928 = vunpack.c.l.b16 %v850
        %v929 = vunpack.c.l.b16 %v851
        %v930 = vunpack.c.l.b16 %v852
        %v931 = vunpack.c.l.b16 %v853
        %v932 = vunpack.c.l.b16 %v854
        %v933 = vunpack.c.l.b16 %v855
        %v934 = vunpack.c.l.b16 %v856
        %v935 = vunpack.c.l.b16 %v857
        %v936 = vunpack.c.l.b16 %v858
        %v937 = vunpack.c.l.b16 %v859
        %v938 = vunpack.c.l.b16 %v860
        %v939 = vunpack.c.l.b16 %v861
        %v940 = vunpack.c.l.b16 %v862
        %v941 = vunpack.c.l.b16 %v863
        %v942 = vunpack.c.l.b16 %v864
        %v943 = vunpack.c.l.b16 %v865
        %v944 = vunpack.c.l.b16 %v866
        %v945 = vunpack.c.l.b16 %v867
        %v946 = vunpack.c.l.b16 %v868
        %v947 = vunpack.c.l.b16 %v869
        %v948 = vpack.c.b16 %v917, %v916
        %v949 = vpack.c.b16 %v919, %v918
        %v950 = vpack.c.b16 %v921, %v920
        %v951 = vpack.c.b16 %v923, %v922
        %v952 = vpack.c.b16 %v925, %v924
        %v953 = vpack.c.b16 %v927, %v926
        %v954 = vpack.c.b16 %v929, %v928
        %v955 = vpack.c.b16 %v931, %v930
        %v956 = vpack.c.b16 %v933, %v932
        %v957 = vpack.c.b16 %v935, %v934
        %v958 = vpack.c.b16 %v937, %v936
        %v959 = vpack.c.b16 %v939, %v938
        %v960 = vpack.c.b16 %v941, %v940
        %v961 = vpack.c.b16 %v943, %v942
        %v962 = vpack.c.b16 %v945, %v944
        %v963 = vpack.c.b16 %v947, %v946
        %980 = vmatpush.bf16.msra.mxu0 %v955
        %981 = vmatpush.bf16.msra.mxu0 %v954
        %982 = vmatpush.bf16.msra.mxu0 %v953
        %983 = vmatpush.bf16.msra.mxu0 %v952
        %984 = vmatpush.bf16.msra.mxu0 %v951
        %985 = vmatpush.bf16.msra.mxu0 %v950
        %986 = vmatpush.bf16.msra.mxu0 %v949
        %987 = vmatpush.bf16.msra.mxu0 %v948
        %988 = vmatmul.bf16.gmra.mxu0 %v880
        %v989 = vpop.f32.mrf.mxu0
        %v990 = vadd.f32 %v872, %v989
        %v991 = vpop.f32.mrf.mxu0
        %v992 = vadd.f32 %v872, %v991
        %993 = vdwg.mxu0
        %994 = vmatpush.bf16.msra.mxu0 %v963
        %995 = vmatpush.bf16.msra.mxu0 %v962
        %996 = vmatpush.bf16.msra.mxu0 %v961
        %997 = vmatpush.bf16.msra.mxu0 %v960
        %998 = vmatpush.bf16.msra.mxu0 %v959
        %999 = vmatpush.bf16.msra.mxu0 %v958
        %1000 = vmatpush.bf16.msra.mxu0 %v957
        %1001 = vmatpush.bf16.msra.mxu0 %v956
        %1002 = vmatmul.bf16.gmra.mxu0 %v881
        %v1003 = vpop.f32.mrf.mxu0
        %v1004 = vadd.f32 %v990, %v1003
        %v1005 = vpop.f32.mrf.mxu0
        %v1006 = vadd.f32 %v992, %v1005
        %1007 = vdwg.mxu0
        %1008 = vst [vmem:[%s256] sm:$0xff] %v1004
        %1009 = vst [vmem:[%s256 + $0x8] sm:$0xff] %v1006
        %s1010 = smul.u32 2, %s21
        %p1011 = scmp.lt.s32.totalorder %s1010, 3
        %s1012 = scalar_select %p1011, %s1010, 3
        %s1013 = smul.addr %s1012, 2
        %s1014 = smul.addr %s1013, 4
        %s1015 = scalar_lea.vmem %s5, %s1014
        %s1016 = sand.u32 %s165, 1
        %s1017 = scalar_lea.sflag [#allocation3], %s1016
        %s1018 = sand.u32 %s165, 1
        %s1019 = smul.addr %s1018, 16
        %s1020 = scalar_lea.vmem [#allocation2], %s1019
        // Predicated region
        $region41: #{image_encoder_forward.4} parent=39 // pred_check
          %p1021 = pneg %p149
        $region42: #{image_encoder_forward.4} parent=39 // pred_check_branch
          %1023 = sbr.rel (%p1021) target = $region44
        $region43: #{image_encoder_forward.4} parent=39 // pred_region
          %s1024 = smul.u32 2, %s21
        $region44: #{image_encoder_forward.4} parent=39 // pred_fallthru
          _
        // Predicated region
        $region45: #{image_encoder_forward.4} parent=39 // pred_check
          %p1025 = pneg %p175
        $region46: #{image_encoder_forward.4} parent=39 // pred_check_branch
          %1027 = sbr.rel (%p1025) target = $region48
        $region47: #{image_encoder_forward.4} parent=39 // pred_region
          %s1028 = smul.u32 2, %s21
          %1030 = vsyncadd %s1017, 0
          %s1031 = smul.addr %s1028, 8
          %s1032 = scalar_lea.hbm %s6, %s1031
          %s1033 = sshll.u32 %s1020, 4
          %s1034 = int_to_ptr.vmem [resolvable:$true] %s1033
          %s1035 = sshll.u32 %s1032, 4
          %s1036 = int_to_ptr.hbm [resolvable:$true] %s1035
          %1041 = dma.vmem_to_hbm [thread:$0]  %s1034, 256, %s1036, %s1017, 128, 128, 8
        $region48: #{image_encoder_forward.4} parent=39 // pred_fallthru
          _
      $region40: #{image_encoder_forward.4} parent=5 // pred_fallthru
        _
      %p1042 = scmp.le.s32.totalorder 2, %s16
      // Predicated region
      $region49: #{image_encoder_forward.4} parent=5 // pred_check
        %p1043 = pneg %p1042
      $region50: #{image_encoder_forward.4} parent=5 // pred_check_branch
        %1045 = sbr.rel (%p1043) target = $region52
      $region51: #{image_encoder_forward.4} parent=5 // pred_region
        %s1046 = ssub.s32 %s16, 2
        // Predicated region
        $region53: #{image_encoder_forward.4} parent=51 // pred_check
          %p1047 = pneg %p155
        $region54: #{image_encoder_forward.4} parent=51 // pred_check_branch
          %1049 = sbr.rel (%p1047) target = $region56
        $region55: #{image_encoder_forward.4} parent=51 // pred_region
          %s1050 = smul.u32 2, %s22
          %p1051 = scmp.lt.s32.totalorder %s1050, 3
          %s1052 = scalar_select %p1051, %s1050, 3
          %s1053 = smul.addr %s1052, 2
          %s1054 = smul.addr %s1053, 4
          %s1055 = scalar_lea.vmem %s5, %s1054
        $region56: #{image_encoder_forward.4} parent=51 // pred_fallthru
          _
        // Predicated region
        $region57: #{image_encoder_forward.4} parent=51 // pred_check
          %p1056 = pneg %p181
        $region58: #{image_encoder_forward.4} parent=51 // pred_check_branch
          %1058 = sbr.rel (%p1056) target = $region60
        $region59: #{image_encoder_forward.4} parent=51 // pred_region
          %s1059 = sand.u32 %s166, 1
          %s1060 = scalar_lea.sflag [#allocation3], %s1059
          %s1061 = sand.u32 %s166, 1
          %s1062 = smul.addr %s1061, 16
          %s1063 = scalar_lea.vmem [#allocation2], %s1062
          %1065 = dma.done %s1060, 256
        $region60: #{image_encoder_forward.4} parent=51 // pred_fallthru
          _
      $region52: #{image_encoder_forward.4} parent=5 // pred_fallthru
        _
    $region6: #{image_encoder_forward.4} parent=1 // loop_footer
      %s20 = sadd.s32 1, %s16
    $region7: #{image_encoder_forward.4} parent=1 // loop_footer_branch
      %15 = sbr.rel target = $region3
    $region8: #{image_encoder_forward.4} parent=1 // loop_exit
      _
    %1066 = vsyncpa [#allocation3], 1
    %s1067 = scalar_lea.sflag [#allocation3], 1
    %1068 = vsyncpa %s1067, 1

// kernel: image_encoder_forward.5
$region0: #{image_encoder_forward.5}
  #allocation0 [shape = 'u32[]', space=smem, size = 0x4, offset = 0x4, fixed_abs, tag = 'smem constant byte address 0x4 - core index']
  #allocation1 [shape = 'u32[72,128]{1,0:T(1,128)}', space=vmem, size = 0x9000, scoped, tag = 'internal scratch']
  %s0 = inlined_call_operand.vmem [shape: bf16[8,1024], index: 0, kind: input, shape index: {}]
  %s1 = inlined_call_operand.vmem [shape: bf16[1024,256], index: 1, kind: input, shape index: {}]
  %s2 = inlined_call_operand.vmem [shape: f32[1,256], index: 2, kind: input, shape index: {}]
  %s3 = inlined_call_operand.vmem [shape: bf16[256,128], index: 3, kind: input, shape index: {}]
  %s4 = inlined_call_operand.vmem [shape: f32[1,128], index: 4, kind: input, shape index: {}]
  %s5 = inlined_call_operand.hbm [shape: bf16[8,256], index: 5, kind: output, shape index: {0}]
  %s6 = inlined_call_operand.vmem [shape: f32[8,128], index: 6, kind: output, shape index: {1}]
  %7 = xla_tuple %s5, %s6
  %s8 = sld [smem:[#allocation0]]
  $region38: #{image_encoder_forward.5} parent=0
    _
  %s10 = ssub.s32 1, %s8
  %s11 = scalar_select 0, %s10, %s8
  $region1: #{image_encoder_forward.5} parent=0
    #allocation2 [shape = 'u8[4096]{0}', space=vmem, size = 0x1000, scoped, tag = 'output window, operand 0, single buffered']
    #allocation3 [shape = 's32[1]{0}', space=sflag, size = 0x4, scoped, tag = 'scoped memory for image_encoder_forward.5']
    %12 = vsyncpa [#allocation3], 0
    // Predicated region
    $region2: #{image_encoder_forward.5} parent=1 // pred_check
      _
    $region3: #{image_encoder_forward.5} parent=1 // pred_check_branch
      %14 = sbr.rel (0) target = $region5
    $region4: #{image_encoder_forward.5} parent=1 // pred_region
      _
    $region5: #{image_encoder_forward.5} parent=1 // pred_fallthru
      _
    // Predicated region
    $region6: #{image_encoder_forward.5} parent=1 // pred_check
      _
    $region7: #{image_encoder_forward.5} parent=1 // pred_check_branch
      %16 = sbr.rel (0) target = $region9
    $region8: #{image_encoder_forward.5} parent=1 // pred_region
      _
    $region9: #{image_encoder_forward.5} parent=1 // pred_fallthru
      _
    // Predicated region
    $region10: #{image_encoder_forward.5} parent=1 // pred_check
      _
    $region11: #{image_encoder_forward.5} parent=1 // pred_check_branch
      %18 = sbr.rel (0) target = $region13
    $region12: #{image_encoder_forward.5} parent=1 // pred_region
      _
    $region13: #{image_encoder_forward.5} parent=1 // pred_fallthru
      _
    // Predicated region
    $region14: #{image_encoder_forward.5} parent=1 // pred_check
      _
    $region15: #{image_encoder_forward.5} parent=1 // pred_check_branch
      %20 = sbr.rel (0) target = $region17
    $region16: #{image_encoder_forward.5} parent=1 // pred_region
      _
    $region17: #{image_encoder_forward.5} parent=1 // pred_fallthru
      _
    // Predicated region
    $region18: #{image_encoder_forward.5} parent=1 // pred_check
      _
    $region19: #{image_encoder_forward.5} parent=1 // pred_check_branch
      %22 = sbr.rel (0) target = $region21
    $region20: #{image_encoder_forward.5} parent=1 // pred_region
      _
    $region21: #{image_encoder_forward.5} parent=1 // pred_fallthru
      _
    %v23 = vld [vmem:[%s0] sm:$0xff]
    %v24 = vld [vmem:[%s0 + $0x8] sm:$0xff]
    %v25 = vld [vmem:[%s0 + $0x10] sm:$0xff]
    %v26 = vld [vmem:[%s0 + $0x18] sm:$0xff]
    %v27 = vld [vmem:[%s1] sm:$0xff]
    %v28 = vld [vmem:[%s1 + $0x8] sm:$0xff]
    %v29 = vld [vmem:[%s1 + $0x10] sm:$0xff]
    %v30 = vld [vmem:[%s1 + $0x18] sm:$0xff]
    %v31 = vld [vmem:[%s1 + $0x20] sm:$0xff]
    %v32 = vld [vmem:[%s1 + $0x28] sm:$0xff]
    %v33 = vld [vmem:[%s1 + $0x30] sm:$0xff]
    %v34 = vld [vmem:[%s1 + $0x38] sm:$0xff]
    %v35 = vld [vmem:[%s1 + $0x40] sm:$0xff]
    %v36 = vld [vmem:[%s1 + $0x48] sm:$0xff]
    %v37 = vld [vmem:[%s1 + $0x50] sm:$0xff]
    %v38 = vld [vmem:[%s1 + $0x58] sm:$0xff]
    %v39 = vld [vmem:[%s1 + $0x60] sm:$0xff]
    %v40 = vld [vmem:[%s1 + $0x68] sm:$0xff]
    %v41 = vld [vmem:[%s1 + $0x70] sm:$0xff]
    %v42 = vld [vmem:[%s1 + $0x78] sm:$0xff]
    %v43 = vld [vmem:[%s1 + $0x80] sm:$0xff]
    %v44 = vld [vmem:[%s1 + $0x88] sm:$0xff]
    %v45 = vld [vmem:[%s1 + $0x90] sm:$0xff]
    %v46 = vld [vmem:[%s1 + $0x98] sm:$0xff]
    %v47 = vld [vmem:[%s1 + $0xa0] sm:$0xff]
    %v48 = vld [vmem:[%s1 + $0xa8] sm:$0xff]
    %v49 = vld [vmem:[%s1 + $0xb0] sm:$0xff]
    %v50 = vld [vmem:[%s1 + $0xb8] sm:$0xff]
    %v51 = vld [vmem:[%s1 + $0xc0] sm:$0xff]
    %v52 = vld [vmem:[%s1 + $0xc8] sm:$0xff]
    %v53 = vld [vmem:[%s1 + $0xd0] sm:$0xff]
    %v54 = vld [vmem:[%s1 + $0xd8] sm:$0xff]
    %v55 = vld [vmem:[%s1 + $0xe0] sm:$0xff]
    %v56 = vld [vmem:[%s1 + $0xe8] sm:$0xff]
    %v57 = vld [vmem:[%s1 + $0xf0] sm:$0xff]
    %v58 = vld [vmem:[%s1 + $0xf8] sm:$0xff]
    %v59 = vld [vmem:[%s1 + $0x100] sm:$0xff]
    %v60 = vld [vmem:[%s1 + $0x108] sm:$0xff]
    %v61 = vld [vmem:[%s1 + $0x110] sm:$0xff]
    %v62 = vld [vmem:[%s1 + $0x118] sm:$0xff]
    %v63 = vld [vmem:[%s1 + $0x120] sm:$0xff]
    %v64 = vld [vmem:[%s1 + $0x128] sm:$0xff]
    %v65 = vld [vmem:[%s1 + $0x130] sm:$0xff]
    %v66 = vld [vmem:[%s1 + $0x138] sm:$0xff]
    %v67 = vld [vmem:[%s1 + $0x140] sm:$0xff]
    %v68 = vld [vmem:[%s1 + $0x148] sm:$0xff]
    %v69 = vld [vmem:[%s1 + $0x150] sm:$0xff]
    %v70 = vld [vmem:[%s1 + $0x158] sm:$0xff]
    %v71 = vld [vmem:[%s1 + $0x160] sm:$0xff]
    %v72 = vld [vmem:[%s1 + $0x168] sm:$0xff]
    %v73 = vld [vmem:[%s1 + $0x170] sm:$0xff]
    %v74 = vld [vmem:[%s1 + $0x178] sm:$0xff]
    %v75 = vld [vmem:[%s1 + $0x180] sm:$0xff]
    %v76 = vld [vmem:[%s1 + $0x188] sm:$0xff]
    %v77 = vld [vmem:[%s1 + $0x190] sm:$0xff]
    %v78 = vld [vmem:[%s1 + $0x198] sm:$0xff]
    %v79 = vld [vmem:[%s1 + $0x1a0] sm:$0xff]
    %v80 = vld [vmem:[%s1 + $0x1a8] sm:$0xff]
    %v81 = vld [vmem:[%s1 + $0x1b0] sm:$0xff]
    %v82 = vld [vmem:[%s1 + $0x1b8] sm:$0xff]
    %v83 = vld [vmem:[%s1 + $0x1c0] sm:$0xff]
    %v84 = vld [vmem:[%s1 + $0x1c8] sm:$0xff]
    %v85 = vld [vmem:[%s1 + $0x1d0] sm:$0xff]
    %v86 = vld [vmem:[%s1 + $0x1d8] sm:$0xff]
    %v87 = vld [vmem:[%s1 + $0x1e0] sm:$0xff]
    %v88 = vld [vmem:[%s1 + $0x1e8] sm:$0xff]
    %v89 = vld [vmem:[%s1 + $0x1f0] sm:$0xff]
    %v90 = vld [vmem:[%s1 + $0x1f8] sm:$0xff]
    %v91 = vld [vmem:[%s1 + $0x200] sm:$0xff]
    %v92 = vld [vmem:[%s1 + $0x208] sm:$0xff]
    %v93 = vld [vmem:[%s1 + $0x210] sm:$0xff]
    %v94 = vld [vmem:[%s1 + $0x218] sm:$0xff]
    %v95 = vld [vmem:[%s1 + $0x220] sm:$0xff]
    %v96 = vld [vmem:[%s1 + $0x228] sm:$0xff]
    %v97 = vld [vmem:[%s1 + $0x230] sm:$0xff]
    %v98 = vld [vmem:[%s1 + $0x238] sm:$0xff]
    %v99 = vld [vmem:[%s1 + $0x240] sm:$0xff]
    %v100 = vld [vmem:[%s1 + $0x248] sm:$0xff]
    %v101 = vld [vmem:[%s1 + $0x250] sm:$0xff]
    %v102 = vld [vmem:[%s1 + $0x258] sm:$0xff]
    %v103 = vld [vmem:[%s1 + $0x260] sm:$0xff]
    %v104 = vld [vmem:[%s1 + $0x268] sm:$0xff]
    %v105 = vld [vmem:[%s1 + $0x270] sm:$0xff]
    %v106 = vld [vmem:[%s1 + $0x278] sm:$0xff]
    %v107 = vld [vmem:[%s1 + $0x280] sm:$0xff]
    %v108 = vld [vmem:[%s1 + $0x288] sm:$0xff]
    %v109 = vld [vmem:[%s1 + $0x290] sm:$0xff]
    %v110 = vld [vmem:[%s1 + $0x298] sm:$0xff]
    %v111 = vld [vmem:[%s1 + $0x2a0] sm:$0xff]
    %v112 = vld [vmem:[%s1 + $0x2a8] sm:$0xff]
    %v113 = vld [vmem:[%s1 + $0x2b0] sm:$0xff]
    %v114 = vld [vmem:[%s1 + $0x2b8] sm:$0xff]
    %v115 = vld [vmem:[%s1 + $0x2c0] sm:$0xff]
    %v116 = vld [vmem:[%s1 + $0x2c8] sm:$0xff]
    %v117 = vld [vmem:[%s1 + $0x2d0] sm:$0xff]
    %v118 = vld [vmem:[%s1 + $0x2d8] sm:$0xff]
    %v119 = vld [vmem:[%s1 + $0x2e0] sm:$0xff]
    %v120 = vld [vmem:[%s1 + $0x2e8] sm:$0xff]
    %v121 = vld [vmem:[%s1 + $0x2f0] sm:$0xff]
    %v122 = vld [vmem:[%s1 + $0x2f8] sm:$0xff]
    %v123 = vld [vmem:[%s1 + $0x300] sm:$0xff]
    %v124 = vld [vmem:[%s1 + $0x308] sm:$0xff]
    %v125 = vld [vmem:[%s1 + $0x310] sm:$0xff]
    %v126 = vld [vmem:[%s1 + $0x318] sm:$0xff]
    %v127 = vld [vmem:[%s1 + $0x320] sm:$0xff]
    %v128 = vld [vmem:[%s1 + $0x328] sm:$0xff]
    %v129 = vld [vmem:[%s1 + $0x330] sm:$0xff]
    %v130 = vld [vmem:[%s1 + $0x338] sm:$0xff]
    %v131 = vld [vmem:[%s1 + $0x340] sm:$0xff]
    %v132 = vld [vmem:[%s1 + $0x348] sm:$0xff]
    %v133 = vld [vmem:[%s1 + $0x350] sm:$0xff]
    %v134 = vld [vmem:[%s1 + $0x358] sm:$0xff]
    %v135 = vld [vmem:[%s1 + $0x360] sm:$0xff]
    %v136 = vld [vmem:[%s1 + $0x368] sm:$0xff]
    %v137 = vld [vmem:[%s1 + $0x370] sm:$0xff]
    %v138 = vld [vmem:[%s1 + $0x378] sm:$0xff]
    %v139 = vld [vmem:[%s1 + $0x380] sm:$0xff]
    %v140 = vld [vmem:[%s1 + $0x388] sm:$0xff]
    %v141 = vld [vmem:[%s1 + $0x390] sm:$0xff]
    %v142 = vld [vmem:[%s1 + $0x398] sm:$0xff]
    %v143 = vld [vmem:[%s1 + $0x3a0] sm:$0xff]
    %v144 = vld [vmem:[%s1 + $0x3a8] sm:$0xff]
    %v145 = vld [vmem:[%s1 + $0x3b0] sm:$0xff]
    %v146 = vld [vmem:[%s1 + $0x3b8] sm:$0xff]
    %v147 = vld [vmem:[%s1 + $0x3c0] sm:$0xff]
    %v148 = vld [vmem:[%s1 + $0x3c8] sm:$0xff]
    %v149 = vld [vmem:[%s1 + $0x3d0] sm:$0xff]
    %v150 = vld [vmem:[%s1 + $0x3d8] sm:$0xff]
    %v151 = vld [vmem:[%s1 + $0x3e0] sm:$0xff]
    %v152 = vld [vmem:[%s1 + $0x3e8] sm:$0xff]
    %v153 = vld [vmem:[%s1 + $0x3f0] sm:$0xff]
    %v154 = vld [vmem:[%s1 + $0x3f8] sm:$0xff]
    %v155 = vld [vmem:[%s2] sm:$0x3]
    %v157 = vperm.slane %v155, 0
    %v158 = vperm.slane %v155, 1
    %v165 = vunpack.c.l.b16 %v23
    %v166 = vunpack.c.h.b16 %v23
    %v167 = vunpack.c.l.b16 %v24
    %v168 = vunpack.c.h.b16 %v24
    %v169 = vunpack.c.l.b16 %v25
    %v170 = vunpack.c.h.b16 %v25
    %v171 = vunpack.c.l.b16 %v26
    %v172 = vunpack.c.h.b16 %v26
    %v173 = vpack.c.b16 %v165, %v165
    %v174 = vpack.c.b16 %v166, %v166
    %v175 = vpack.c.b16 %v167, %v167
    %v176 = vpack.c.b16 %v168, %v168
    %v177 = vpack.c.b16 %v169, %v169
    %v178 = vpack.c.b16 %v170, %v170
    %v179 = vpack.c.b16 %v171, %v171
    %v180 = vpack.c.b16 %v172, %v172
    %v317 = vunpack.c.l.b16 %v27
    %v318 = vunpack.c.h.b16 %v27
    %v319 = vunpack.c.l.b16 %v28
    %v320 = vunpack.c.h.b16 %v28
    %v321 = vunpack.c.l.b16 %v29
    %v322 = vunpack.c.h.b16 %v29
    %v323 = vunpack.c.l.b16 %v30
    %v324 = vunpack.c.h.b16 %v30
    %v325 = vunpack.c.l.b16 %v31
    %v326 = vunpack.c.h.b16 %v31
    %v327 = vunpack.c.l.b16 %v32
    %v328 = vunpack.c.h.b16 %v32
    %v329 = vunpack.c.l.b16 %v33
    %v330 = vunpack.c.h.b16 %v33
    %v331 = vunpack.c.l.b16 %v34
    %v332 = vunpack.c.h.b16 %v34
    %v333 = vunpack.c.l.b16 %v35
    %v334 = vunpack.c.h.b16 %v35
    %v335 = vunpack.c.l.b16 %v36
    %v336 = vunpack.c.h.b16 %v36
    %v337 = vunpack.c.l.b16 %v37
    %v338 = vunpack.c.h.b16 %v37
    %v339 = vunpack.c.l.b16 %v38
    %v340 = vunpack.c.h.b16 %v38
    %v341 = vunpack.c.l.b16 %v39
    %v342 = vunpack.c.h.b16 %v39
    %v343 = vunpack.c.l.b16 %v40
    %v344 = vunpack.c.h.b16 %v40
    %v345 = vunpack.c.l.b16 %v41
    %v346 = vunpack.c.h.b16 %v41
    %v347 = vunpack.c.l.b16 %v42
    %v348 = vunpack.c.h.b16 %v42
    %v349 = vunpack.c.l.b16 %v43
    %v350 = vunpack.c.h.b16 %v43
    %v351 = vunpack.c.l.b16 %v44
    %v352 = vunpack.c.h.b16 %v44
    %v353 = vunpack.c.l.b16 %v45
    %v354 = vunpack.c.h.b16 %v45
    %v355 = vunpack.c.l.b16 %v46
    %v356 = vunpack.c.h.b16 %v46
    %v357 = vunpack.c.l.b16 %v47
    %v358 = vunpack.c.h.b16 %v47
    %v359 = vunpack.c.l.b16 %v48
    %v360 = vunpack.c.h.b16 %v48
    %v361 = vunpack.c.l.b16 %v49
    %v362 = vunpack.c.h.b16 %v49
    %v363 = vunpack.c.l.b16 %v50
    %v364 = vunpack.c.h.b16 %v50
    %v365 = vunpack.c.l.b16 %v51
    %v366 = vunpack.c.h.b16 %v51
    %v367 = vunpack.c.l.b16 %v52
    %v368 = vunpack.c.h.b16 %v52
    %v369 = vunpack.c.l.b16 %v53
    %v370 = vunpack.c.h.b16 %v53
    %v371 = vunpack.c.l.b16 %v54
    %v372 = vunpack.c.h.b16 %v54
    %v373 = vunpack.c.l.b16 %v55
    %v374 = vunpack.c.h.b16 %v55
    %v375 = vunpack.c.l.b16 %v56
    %v376 = vunpack.c.h.b16 %v56
    %v377 = vunpack.c.l.b16 %v57
    %v378 = vunpack.c.h.b16 %v57
    %v379 = vunpack.c.l.b16 %v58
    %v380 = vunpack.c.h.b16 %v58
    %v381 = vunpack.c.l.b16 %v59
    %v382 = vunpack.c.h.b16 %v59
    %v383 = vunpack.c.l.b16 %v60
    %v384 = vunpack.c.h.b16 %v60
    %v385 = vunpack.c.l.b16 %v61
    %v386 = vunpack.c.h.b16 %v61
    %v387 = vunpack.c.l.b16 %v62
    %v388 = vunpack.c.h.b16 %v62
    %v389 = vunpack.c.l.b16 %v63
    %v390 = vunpack.c.h.b16 %v63
    %v391 = vunpack.c.l.b16 %v64
    %v392 = vunpack.c.h.b16 %v64
    %v393 = vunpack.c.l.b16 %v65
    %v394 = vunpack.c.h.b16 %v65
    %v395 = vunpack.c.l.b16 %v66
    %v396 = vunpack.c.h.b16 %v66
    %v397 = vunpack.c.l.b16 %v67
    %v398 = vunpack.c.h.b16 %v67
    %v399 = vunpack.c.l.b16 %v68
    %v400 = vunpack.c.h.b16 %v68
    %v401 = vunpack.c.l.b16 %v69
    %v402 = vunpack.c.h.b16 %v69
    %v403 = vunpack.c.l.b16 %v70
    %v404 = vunpack.c.h.b16 %v70
    %v405 = vunpack.c.l.b16 %v71
    %v406 = vunpack.c.h.b16 %v71
    %v407 = vunpack.c.l.b16 %v72
    %v408 = vunpack.c.h.b16 %v72
    %v409 = vunpack.c.l.b16 %v73
    %v410 = vunpack.c.h.b16 %v73
    %v411 = vunpack.c.l.b16 %v74
    %v412 = vunpack.c.h.b16 %v74
    %v413 = vunpack.c.l.b16 %v75
    %v414 = vunpack.c.h.b16 %v75
    %v415 = vunpack.c.l.b16 %v76
    %v416 = vunpack.c.h.b16 %v76
    %v417 = vunpack.c.l.b16 %v77
    %v418 = vunpack.c.h.b16 %v77
    %v419 = vunpack.c.l.b16 %v78
    %v420 = vunpack.c.h.b16 %v78
    %v421 = vunpack.c.l.b16 %v79
    %v422 = vunpack.c.h.b16 %v79
    %v423 = vunpack.c.l.b16 %v80
    %v424 = vunpack.c.h.b16 %v80
    %v425 = vunpack.c.l.b16 %v81
    %v426 = vunpack.c.h.b16 %v81
    %v427 = vunpack.c.l.b16 %v82
    %v428 = vunpack.c.h.b16 %v82
    %v429 = vunpack.c.l.b16 %v83
    %v430 = vunpack.c.h.b16 %v83
    %v431 = vunpack.c.l.b16 %v84
    %v432 = vunpack.c.h.b16 %v84
    %v433 = vunpack.c.l.b16 %v85
    %v434 = vunpack.c.h.b16 %v85
    %v435 = vunpack.c.l.b16 %v86
    %v436 = vunpack.c.h.b16 %v86
    %v437 = vunpack.c.l.b16 %v87
    %v438 = vunpack.c.h.b16 %v87
    %v439 = vunpack.c.l.b16 %v88
    %v440 = vunpack.c.h.b16 %v88
    %v441 = vunpack.c.l.b16 %v89
    %v442 = vunpack.c.h.b16 %v89
    %v443 = vunpack.c.l.b16 %v90
    %v444 = vunpack.c.h.b16 %v90
    %v445 = vunpack.c.l.b16 %v91
    %v446 = vunpack.c.h.b16 %v91
    %v447 = vunpack.c.l.b16 %v92
    %v448 = vunpack.c.h.b16 %v92
    %v449 = vunpack.c.l.b16 %v93
    %v450 = vunpack.c.h.b16 %v93
    %v451 = vunpack.c.l.b16 %v94
    %v452 = vunpack.c.h.b16 %v94
    %v453 = vunpack.c.l.b16 %v95
    %v454 = vunpack.c.h.b16 %v95
    %v455 = vunpack.c.l.b16 %v96
    %v456 = vunpack.c.h.b16 %v96
    %v457 = vunpack.c.l.b16 %v97
    %v458 = vunpack.c.h.b16 %v97
    %v459 = vunpack.c.l.b16 %v98
    %v460 = vunpack.c.h.b16 %v98
    %v461 = vunpack.c.l.b16 %v99
    %v462 = vunpack.c.h.b16 %v99
    %v463 = vunpack.c.l.b16 %v100
    %v464 = vunpack.c.h.b16 %v100
    %v465 = vunpack.c.l.b16 %v101
    %v466 = vunpack.c.h.b16 %v101
    %v467 = vunpack.c.l.b16 %v102
    %v468 = vunpack.c.h.b16 %v102
    %v469 = vunpack.c.l.b16 %v103
    %v470 = vunpack.c.h.b16 %v103
    %v471 = vunpack.c.l.b16 %v104
    %v472 = vunpack.c.h.b16 %v104
    %v473 = vunpack.c.l.b16 %v105
    %v474 = vunpack.c.h.b16 %v105
    %v475 = vunpack.c.l.b16 %v106
    %v476 = vunpack.c.h.b16 %v106
    %v477 = vunpack.c.l.b16 %v107
    %v478 = vunpack.c.h.b16 %v107
    %v479 = vunpack.c.l.b16 %v108
    %v480 = vunpack.c.h.b16 %v108
    %v481 = vunpack.c.l.b16 %v109
    %v482 = vunpack.c.h.b16 %v109
    %v483 = vunpack.c.l.b16 %v110
    %v484 = vunpack.c.h.b16 %v110
    %v485 = vunpack.c.l.b16 %v111
    %v486 = vunpack.c.h.b16 %v111
    %v487 = vunpack.c.l.b16 %v112
    %v488 = vunpack.c.h.b16 %v112
    %v489 = vunpack.c.l.b16 %v113
    %v490 = vunpack.c.h.b16 %v113
    %v491 = vunpack.c.l.b16 %v114
    %v492 = vunpack.c.h.b16 %v114
    %v493 = vunpack.c.l.b16 %v115
    %v494 = vunpack.c.h.b16 %v115
    %v495 = vunpack.c.l.b16 %v116
    %v496 = vunpack.c.h.b16 %v116
    %v497 = vunpack.c.l.b16 %v117
    %v498 = vunpack.c.h.b16 %v117
    %v499 = vunpack.c.l.b16 %v118
    %v500 = vunpack.c.h.b16 %v118
    %v501 = vunpack.c.l.b16 %v119
    %v502 = vunpack.c.h.b16 %v119
    %v503 = vunpack.c.l.b16 %v120
    %v504 = vunpack.c.h.b16 %v120
    %v505 = vunpack.c.l.b16 %v121
    %v506 = vunpack.c.h.b16 %v121
    %v507 = vunpack.c.l.b16 %v122
    %v508 = vunpack.c.h.b16 %v122
    %v509 = vunpack.c.l.b16 %v123
    %v510 = vunpack.c.h.b16 %v123
    %v511 = vunpack.c.l.b16 %v124
    %v512 = vunpack.c.h.b16 %v124
    %v513 = vunpack.c.l.b16 %v125
    %v514 = vunpack.c.h.b16 %v125
    %v515 = vunpack.c.l.b16 %v126
    %v516 = vunpack.c.h.b16 %v126
    %v517 = vunpack.c.l.b16 %v127
    %v518 = vunpack.c.h.b16 %v127
    %v519 = vunpack.c.l.b16 %v128
    %v520 = vunpack.c.h.b16 %v128
    %v521 = vunpack.c.l.b16 %v129
    %v522 = vunpack.c.h.b16 %v129
    %v523 = vunpack.c.l.b16 %v130
    %v524 = vunpack.c.h.b16 %v130
    %v525 = vunpack.c.l.b16 %v131
    %v526 = vunpack.c.h.b16 %v131
    %v527 = vunpack.c.l.b16 %v132
    %v528 = vunpack.c.h.b16 %v132
    %v529 = vunpack.c.l.b16 %v133
    %v530 = vunpack.c.h.b16 %v133
    %v531 = vunpack.c.l.b16 %v134
    %v532 = vunpack.c.h.b16 %v134
    %v533 = vunpack.c.l.b16 %v135
    %v534 = vunpack.c.h.b16 %v135
    %v535 = vunpack.c.l.b16 %v136
    %v536 = vunpack.c.h.b16 %v136
    %v537 = vunpack.c.l.b16 %v137
    %v538 = vunpack.c.h.b16 %v137
    %v539 = vunpack.c.l.b16 %v138
    %v540 = vunpack.c.h.b16 %v138
    %v541 = vunpack.c.l.b16 %v139
    %v542 = vunpack.c.h.b16 %v139
    %v543 = vunpack.c.l.b16 %v140
    %v544 = vunpack.c.h.b16 %v140
    %v545 = vunpack.c.l.b16 %v141
    %v546 = vunpack.c.h.b16 %v141
    %v547 = vunpack.c.l.b16 %v142
    %v548 = vunpack.c.h.b16 %v142
    %v549 = vunpack.c.l.b16 %v143
    %v550 = vunpack.c.h.b16 %v143
    %v551 = vunpack.c.l.b16 %v144
    %v552 = vunpack.c.h.b16 %v144
    %v553 = vunpack.c.l.b16 %v145
    %v554 = vunpack.c.h.b16 %v145
    %v555 = vunpack.c.l.b16 %v146
    %v556 = vunpack.c.h.b16 %v146
    %v557 = vunpack.c.l.b16 %v147
    %v558 = vunpack.c.h.b16 %v147
    %v559 = vunpack.c.l.b16 %v148
    %v560 = vunpack.c.h.b16 %v148
    %v561 = vunpack.c.l.b16 %v149
    %v562 = vunpack.c.h.b16 %v149
    %v563 = vunpack.c.l.b16 %v150
    %v564 = vunpack.c.h.b16 %v150
    %v565 = vunpack.c.l.b16 %v151
    %v566 = vunpack.c.h.b16 %v151
    %v567 = vunpack.c.l.b16 %v152
    %v568 = vunpack.c.h.b16 %v152
    %v569 = vunpack.c.l.b16 %v153
    %v570 = vunpack.c.h.b16 %v153
    %v571 = vunpack.c.l.b16 %v154
    %v572 = vunpack.c.h.b16 %v154
    %v573 = vpack.c.b16 %v319, %v317
    %v574 = vpack.c.b16 %v320, %v318
    %v575 = vpack.c.b16 %v323, %v321
    %v576 = vpack.c.b16 %v324, %v322
    %v577 = vpack.c.b16 %v327, %v325
    %v578 = vpack.c.b16 %v328, %v326
    %v579 = vpack.c.b16 %v331, %v329
    %v580 = vpack.c.b16 %v332, %v330
    %v581 = vpack.c.b16 %v335, %v333
    %v582 = vpack.c.b16 %v336, %v334
    %v583 = vpack.c.b16 %v339, %v337
    %v584 = vpack.c.b16 %v340, %v338
    %v585 = vpack.c.b16 %v343, %v341
    %v586 = vpack.c.b16 %v344, %v342
    %v587 = vpack.c.b16 %v347, %v345
    %v588 = vpack.c.b16 %v348, %v346
    %v589 = vpack.c.b16 %v351, %v349
    %v590 = vpack.c.b16 %v352, %v350
    %v591 = vpack.c.b16 %v355, %v353
    %v592 = vpack.c.b16 %v356, %v354
    %v593 = vpack.c.b16 %v359, %v357
    %v594 = vpack.c.b16 %v360, %v358
    %v595 = vpack.c.b16 %v363, %v361
    %v596 = vpack.c.b16 %v364, %v362
    %v597 = vpack.c.b16 %v367, %v365
    %v598 = vpack.c.b16 %v368, %v366
    %v599 = vpack.c.b16 %v371, %v369
    %v600 = vpack.c.b16 %v372, %v370
    %v601 = vpack.c.b16 %v375, %v373
    %v602 = vpack.c.b16 %v376, %v374
    %v603 = vpack.c.b16 %v379, %v377
    %v604 = vpack.c.b16 %v380, %v378
    %v605 = vpack.c.b16 %v383, %v381
    %v606 = vpack.c.b16 %v384, %v382
    %v607 = vpack.c.b16 %v387, %v385
    %v608 = vpack.c.b16 %v388, %v386
    %v609 = vpack.c.b16 %v391, %v389
    %v610 = vpack.c.b16 %v392, %v390
    %v611 = vpack.c.b16 %v395, %v393
    %v612 = vpack.c.b16 %v396, %v394
    %v613 = vpack.c.b16 %v399, %v397
    %v614 = vpack.c.b16 %v400, %v398
    %v615 = vpack.c.b16 %v403, %v401
    %v616 = vpack.c.b16 %v404, %v402
    %v617 = vpack.c.b16 %v407, %v405
    %v618 = vpack.c.b16 %v408, %v406
    %v619 = vpack.c.b16 %v411, %v409
    %v620 = vpack.c.b16 %v412, %v410
    %v621 = vpack.c.b16 %v415, %v413
    %v622 = vpack.c.b16 %v416, %v414
    %v623 = vpack.c.b16 %v419, %v417
    %v624 = vpack.c.b16 %v420, %v418
    %v625 = vpack.c.b16 %v423, %v421
    %v626 = vpack.c.b16 %v424, %v422
    %v627 = vpack.c.b16 %v427, %v425
    %v628 = vpack.c.b16 %v428, %v426
    %v629 = vpack.c.b16 %v431, %v429
    %v630 = vpack.c.b16 %v432, %v430
    %v631 = vpack.c.b16 %v435, %v433
    %v632 = vpack.c.b16 %v436, %v434
    %v633 = vpack.c.b16 %v439, %v437
    %v634 = vpack.c.b16 %v440, %v438
    %v635 = vpack.c.b16 %v443, %v441
    %v636 = vpack.c.b16 %v444, %v442
    %v637 = vpack.c.b16 %v447, %v445
    %v638 = vpack.c.b16 %v448, %v446
    %v639 = vpack.c.b16 %v451, %v449
    %v640 = vpack.c.b16 %v452, %v450
    %v641 = vpack.c.b16 %v455, %v453
    %v642 = vpack.c.b16 %v456, %v454
    %v643 = vpack.c.b16 %v459, %v457
    %v644 = vpack.c.b16 %v460, %v458
    %v645 = vpack.c.b16 %v463, %v461
    %v646 = vpack.c.b16 %v464, %v462
    %v647 = vpack.c.b16 %v467, %v465
    %v648 = vpack.c.b16 %v468, %v466
    %v649 = vpack.c.b16 %v471, %v469
    %v650 = vpack.c.b16 %v472, %v470
    %v651 = vpack.c.b16 %v475, %v473
    %v652 = vpack.c.b16 %v476, %v474
    %v653 = vpack.c.b16 %v479, %v477
    %v654 = vpack.c.b16 %v480, %v478
    %v655 = vpack.c.b16 %v483, %v481
    %v656 = vpack.c.b16 %v484, %v482
    %v657 = vpack.c.b16 %v487, %v485
    %v658 = vpack.c.b16 %v488, %v486
    %v659 = vpack.c.b16 %v491, %v489
    %v660 = vpack.c.b16 %v492, %v490
    %v661 = vpack.c.b16 %v495, %v493
    %v662 = vpack.c.b16 %v496, %v494
    %v663 = vpack.c.b16 %v499, %v497
    %v664 = vpack.c.b16 %v500, %v498
    %v665 = vpack.c.b16 %v503, %v501
    %v666 = vpack.c.b16 %v504, %v502
    %v667 = vpack.c.b16 %v507, %v505
    %v668 = vpack.c.b16 %v508, %v506
    %v669 = vpack.c.b16 %v511, %v509
    %v670 = vpack.c.b16 %v512, %v510
    %v671 = vpack.c.b16 %v515, %v513
    %v672 = vpack.c.b16 %v516, %v514
    %v673 = vpack.c.b16 %v519, %v517
    %v674 = vpack.c.b16 %v520, %v518
    %v675 = vpack.c.b16 %v523, %v521
    %v676 = vpack.c.b16 %v524, %v522
    %v677 = vpack.c.b16 %v527, %v525
    %v678 = vpack.c.b16 %v528, %v526
    %v679 = vpack.c.b16 %v531, %v529
    %v680 = vpack.c.b16 %v532, %v530
    %v681 = vpack.c.b16 %v535, %v533
    %v682 = vpack.c.b16 %v536, %v534
    %v683 = vpack.c.b16 %v539, %v537
    %v684 = vpack.c.b16 %v540, %v538
    %v685 = vpack.c.b16 %v543, %v541
    %v686 = vpack.c.b16 %v544, %v542
    %v687 = vpack.c.b16 %v547, %v545
    %v688 = vpack.c.b16 %v548, %v546
    %v689 = vpack.c.b16 %v551, %v549
    %v690 = vpack.c.b16 %v552, %v550
    %v691 = vpack.c.b16 %v555, %v553
    %v692 = vpack.c.b16 %v556, %v554
    %v693 = vpack.c.b16 %v559, %v557
    %v694 = vpack.c.b16 %v560, %v558
    %v695 = vpack.c.b16 %v563, %v561
    %v696 = vpack.c.b16 %v564, %v562
    %v697 = vpack.c.b16 %v567, %v565
    %v698 = vpack.c.b16 %v568, %v566
    %v699 = vpack.c.b16 %v571, %v569
    %v700 = vpack.c.b16 %v572, %v570
    %829 = vmatpush.bf16.msra.mxu0 %v587
    %830 = vmatpush.bf16.msra.mxu0 %v585
    %831 = vmatpush.bf16.msra.mxu0 %v583
    %832 = vmatpush.bf16.msra.mxu0 %v581
    %833 = vmatpush.bf16.msra.mxu0 %v579
    %834 = vmatpush.bf16.msra.mxu0 %v577
    %835 = vmatpush.bf16.msra.mxu0 %v575
    %836 = vmatpush.bf16.msra.mxu0 %v573
    %837 = vmatmul.bf16.gmra.mxu0 %v173
    %v838 = vpop.f32.mrf.mxu0
    %v839 = vadd.f32 %v157, %v838
    %v840 = vpop.f32.mrf.mxu0
    %841 = vdwg.mxu0
    %842 = vmatpush.bf16.msra.mxu0 %v603
    %843 = vmatpush.bf16.msra.mxu0 %v601
    %844 = vmatpush.bf16.msra.mxu0 %v599
    %845 = vmatpush.bf16.msra.mxu0 %v597
    %846 = vmatpush.bf16.msra.mxu0 %v595
    %847 = vmatpush.bf16.msra.mxu0 %v593
    %848 = vmatpush.bf16.msra.mxu0 %v591
    %849 = vmatpush.bf16.msra.mxu0 %v589
    %850 = vmatmul.bf16.gmra.mxu0 %v174
    %v851 = vpop.f32.mrf.mxu0
    %v852 = vadd.f32 %v839, %v851
    %v853 = vpop.f32.mrf.mxu0
    %854 = vdwg.mxu0
    %855 = vmatpush.bf16.msra.mxu0 %v619
    %856 = vmatpush.bf16.msra.mxu0 %v617
    %857 = vmatpush.bf16.msra.mxu0 %v615
    %858 = vmatpush.bf16.msra.mxu0 %v613
    %859 = vmatpush.bf16.msra.mxu0 %v611
    %860 = vmatpush.bf16.msra.mxu0 %v609
    %861 = vmatpush.bf16.msra.mxu0 %v607
    %862 = vmatpush.bf16.msra.mxu0 %v605
    %863 = vmatmul.bf16.gmra.mxu0 %v175
    %v864 = vpop.f32.mrf.mxu0
    %v865 = vadd.f32 %v852, %v864
    %v866 = vpop.f32.mrf.mxu0
    %867 = vdwg.mxu0
    %868 = vmatpush.bf16.msra.mxu0 %v635
    %869 = vmatpush.bf16.msra.mxu0 %v633
    %870 = vmatpush.bf16.msra.mxu0 %v631
    %871 = vmatpush.bf16.msra.mxu0 %v629
    %872 = vmatpush.bf16.msra.mxu0 %v627
    %873 = vmatpush.bf16.msra.mxu0 %v625
    %874 = vmatpush.bf16.msra.mxu0 %v623
    %875 = vmatpush.bf16.msra.mxu0 %v621
    %876 = vmatmul.bf16.gmra.mxu0 %v176
    %v877 = vpop.f32.mrf.mxu0
    %v878 = vadd.f32 %v865, %v877
    %v879 = vpop.f32.mrf.mxu0
    %880 = vdwg.mxu0
    %881 = vmatpush.bf16.msra.mxu0 %v651
    %882 = vmatpush.bf16.msra.mxu0 %v649
    %883 = vmatpush.bf16.msra.mxu0 %v647
    %884 = vmatpush.bf16.msra.mxu0 %v645
    %885 = vmatpush.bf16.msra.mxu0 %v643
    %886 = vmatpush.bf16.msra.mxu0 %v641
    %887 = vmatpush.bf16.msra.mxu0 %v639
    %888 = vmatpush.bf16.msra.mxu0 %v637
    %889 = vmatmul.bf16.gmra.mxu0 %v177
    %v890 = vpop.f32.mrf.mxu0
    %v891 = vadd.f32 %v878, %v890
    %v892 = vpop.f32.mrf.mxu0
    %893 = vdwg.mxu0
    %894 = vmatpush.bf16.msra.mxu0 %v667
    %895 = vmatpush.bf16.msra.mxu0 %v665
    %896 = vmatpush.bf16.msra.mxu0 %v663
    %897 = vmatpush.bf16.msra.mxu0 %v661
    %898 = vmatpush.bf16.msra.mxu0 %v659
    %899 = vmatpush.bf16.msra.mxu0 %v657
    %900 = vmatpush.bf16.msra.mxu0 %v655
    %901 = vmatpush.bf16.msra.mxu0 %v653
    %902 = vmatmul.bf16.gmra.mxu0 %v178
    %v903 = vpop.f32.mrf.mxu0
    %v904 = vadd.f32 %v891, %v903
    %v905 = vpop.f32.mrf.mxu0
    %906 = vdwg.mxu0
    %907 = vmatpush.bf16.msra.mxu0 %v683
    %908 = vmatpush.bf16.msra.mxu0 %v681
    %909 = vmatpush.bf16.msra.mxu0 %v679
    %910 = vmatpush.bf16.msra.mxu0 %v677
    %911 = vmatpush.bf16.msra.mxu0 %v675
    %912 = vmatpush.bf16.msra.mxu0 %v673
    %913 = vmatpush.bf16.msra.mxu0 %v671
    %914 = vmatpush.bf16.msra.mxu0 %v669
    %915 = vmatmul.bf16.gmra.mxu0 %v179
    %v916 = vpop.f32.mrf.mxu0
    %v917 = vadd.f32 %v904, %v916
    %v918 = vpop.f32.mrf.mxu0
    %919 = vdwg.mxu0
    %920 = vmatpush.bf16.msra.mxu0 %v699
    %921 = vmatpush.bf16.msra.mxu0 %v697
    %922 = vmatpush.bf16.msra.mxu0 %v695
    %923 = vmatpush.bf16.msra.mxu0 %v693
    %924 = vmatpush.bf16.msra.mxu0 %v691
    %925 = vmatpush.bf16.msra.mxu0 %v689
    %926 = vmatpush.bf16.msra.mxu0 %v687
    %927 = vmatpush.bf16.msra.mxu0 %v685
    %928 = vmatmul.bf16.gmra.mxu0 %v180
    %v929 = vpop.f32.mrf.mxu0
    %v930 = vadd.f32 %v917, %v929
    %v931 = vpop.f32.mrf.mxu0
    %932 = vdwg.mxu0
    %933 = vmatpush.bf16.msra.mxu0 %v588
    %934 = vmatpush.bf16.msra.mxu0 %v586
    %935 = vmatpush.bf16.msra.mxu0 %v584
    %936 = vmatpush.bf16.msra.mxu0 %v582
    %937 = vmatpush.bf16.msra.mxu0 %v580
    %938 = vmatpush.bf16.msra.mxu0 %v578
    %939 = vmatpush.bf16.msra.mxu0 %v576
    %940 = vmatpush.bf16.msra.mxu0 %v574
    %941 = vmatmul.bf16.gmra.mxu0 %v173
    %v942 = vpop.f32.mrf.mxu0
    %v943 = vadd.f32 %v158, %v942
    %v944 = vpop.f32.mrf.mxu0
    %945 = vdwg.mxu0
    %946 = vmatpush.bf16.msra.mxu0 %v604
    %947 = vmatpush.bf16.msra.mxu0 %v602
    %948 = vmatpush.bf16.msra.mxu0 %v600
    %949 = vmatpush.bf16.msra.mxu0 %v598
    %950 = vmatpush.bf16.msra.mxu0 %v596
    %951 = vmatpush.bf16.msra.mxu0 %v594
    %952 = vmatpush.bf16.msra.mxu0 %v592
    %953 = vmatpush.bf16.msra.mxu0 %v590
    %954 = vmatmul.bf16.gmra.mxu0 %v174
    %v955 = vpop.f32.mrf.mxu0
    %v956 = vadd.f32 %v943, %v955
    %v957 = vpop.f32.mrf.mxu0
    %958 = vdwg.mxu0
    %959 = vmatpush.bf16.msra.mxu0 %v620
    %960 = vmatpush.bf16.msra.mxu0 %v618
    %961 = vmatpush.bf16.msra.mxu0 %v616
    %962 = vmatpush.bf16.msra.mxu0 %v614
    %963 = vmatpush.bf16.msra.mxu0 %v612
    %964 = vmatpush.bf16.msra.mxu0 %v610
    %965 = vmatpush.bf16.msra.mxu0 %v608
    %966 = vmatpush.bf16.msra.mxu0 %v606
    %967 = vmatmul.bf16.gmra.mxu0 %v175
    %v968 = vpop.f32.mrf.mxu0
    %v969 = vadd.f32 %v956, %v968
    %v970 = vpop.f32.mrf.mxu0
    %971 = vdwg.mxu0
    %972 = vmatpush.bf16.msra.mxu0 %v636
    %973 = vmatpush.bf16.msra.mxu0 %v634
    %974 = vmatpush.bf16.msra.mxu0 %v632
    %975 = vmatpush.bf16.msra.mxu0 %v630
    %976 = vmatpush.bf16.msra.mxu0 %v628
    %977 = vmatpush.bf16.msra.mxu0 %v626
    %978 = vmatpush.bf16.msra.mxu0 %v624
    %979 = vmatpush.bf16.msra.mxu0 %v622
    %980 = vmatmul.bf16.gmra.mxu0 %v176
    %v981 = vpop.f32.mrf.mxu0
    %v982 = vadd.f32 %v969, %v981
    %v983 = vpop.f32.mrf.mxu0
    %984 = vdwg.mxu0
    %985 = vmatpush.bf16.msra.mxu0 %v652
    %986 = vmatpush.bf16.msra.mxu0 %v650
    %987 = vmatpush.bf16.msra.mxu0 %v648
    %988 = vmatpush.bf16.msra.mxu0 %v646
    %989 = vmatpush.bf16.msra.mxu0 %v644
    %990 = vmatpush.bf16.msra.mxu0 %v642
    %991 = vmatpush.bf16.msra.mxu0 %v640
    %992 = vmatpush.bf16.msra.mxu0 %v638
    %993 = vmatmul.bf16.gmra.mxu0 %v177
    %v994 = vpop.f32.mrf.mxu0
    %v995 = vadd.f32 %v982, %v994
    %v996 = vpop.f32.mrf.mxu0
    %997 = vdwg.mxu0
    %998 = vmatpush.bf16.msra.mxu0 %v668
    %999 = vmatpush.bf16.msra.mxu0 %v666
    %1000 = vmatpush.bf16.msra.mxu0 %v664
    %1001 = vmatpush.bf16.msra.mxu0 %v662
    %1002 = vmatpush.bf16.msra.mxu0 %v660
    %1003 = vmatpush.bf16.msra.mxu0 %v658
    %1004 = vmatpush.bf16.msra.mxu0 %v656
    %1005 = vmatpush.bf16.msra.mxu0 %v654
    %1006 = vmatmul.bf16.gmra.mxu0 %v178
    %v1007 = vpop.f32.mrf.mxu0
    %v1008 = vadd.f32 %v995, %v1007
    %v1009 = vpop.f32.mrf.mxu0
    %1010 = vdwg.mxu0
    %1011 = vmatpush.bf16.msra.mxu0 %v684
    %1012 = vmatpush.bf16.msra.mxu0 %v682
    %1013 = vmatpush.bf16.msra.mxu0 %v680
    %1014 = vmatpush.bf16.msra.mxu0 %v678
    %1015 = vmatpush.bf16.msra.mxu0 %v676
    %1016 = vmatpush.bf16.msra.mxu0 %v674
    %1017 = vmatpush.bf16.msra.mxu0 %v672
    %1018 = vmatpush.bf16.msra.mxu0 %v670
    %1019 = vmatmul.bf16.gmra.mxu0 %v179
    %v1020 = vpop.f32.mrf.mxu0
    %v1021 = vadd.f32 %v1008, %v1020
    %v1022 = vpop.f32.mrf.mxu0
    %1023 = vdwg.mxu0
    %1024 = vmatpush.bf16.msra.mxu0 %v700
    %1025 = vmatpush.bf16.msra.mxu0 %v698
    %1026 = vmatpush.bf16.msra.mxu0 %v696
    %1027 = vmatpush.bf16.msra.mxu0 %v694
    %1028 = vmatpush.bf16.msra.mxu0 %v692
    %1029 = vmatpush.bf16.msra.mxu0 %v690
    %1030 = vmatpush.bf16.msra.mxu0 %v688
    %1031 = vmatpush.bf16.msra.mxu0 %v686
    %1032 = vmatmul.bf16.gmra.mxu0 %v180
    %v1033 = vpop.f32.mrf.mxu0
    %v1034 = vadd.f32 %v1021, %v1033
    %v1035 = vpop.f32.mrf.mxu0
    %1036 = vdwg.mxu0
    %v1037 = vmul.f32 %v930, %v930
    %v1038 = vmul.f32 %v1034, %v1034
    %v1039 = vmul.f32 %v930, %v1037
    %v1040 = vmul.f32 %v1034, %v1038
    %v1041 = vmul.f32 %v1039, 0.044715
    %v1042 = vmul.f32 %v1040, 0.044715
    %v1043 = vadd.f32 %v930, %v1041
    %v1044 = vadd.f32 %v1034, %v1042
    %v1045 = vmul.f32 %v1043, 0.7978846
    %v1046 = vmul.f32 %v1044, 0.7978846
    %v1047 = vtanh.pop %v1045
    %v1048 = vtanh.pop %v1046
    %v1049 = vadd.f32 %v1047, 1.0
    %v1050 = vadd.f32 %v1048, 1.0
    %v1051 = vmul.f32 %v1049, 0.5
    %v1052 = vmul.f32 %v1050, 0.5
    %v1053 = vmul.f32 %v930, %v1051
    %v1054 = vmul.f32 %v1034, %v1052
    %v1055 = vpack.c.bf16 %v1054, %v1053
    %1056 = vst [vmem:[#allocation2] sm:$0xff] %v1055
    %v1057 = vld [vmem:[%s3] sm:$0xf]
    %v1058 = vld [vmem:[%s3 + $0x4] sm:$0xf]
    %v1059 = vld [vmem:[%s3 + $0x8] sm:$0xf]
    %v1060 = vld [vmem:[%s3 + $0xc] sm:$0xf]
    %v1061 = vld [vmem:[%s3 + $0x10] sm:$0xf]
    %v1062 = vld [vmem:[%s3 + $0x14] sm:$0xf]
    %v1063 = vld [vmem:[%s3 + $0x18] sm:$0xf]
    %v1064 = vld [vmem:[%s3 + $0x1c] sm:$0xf]
    %v1065 = vld [vmem:[%s3 + $0x20] sm:$0xf]
    %v1066 = vld [vmem:[%s3 + $0x24] sm:$0xf]
    %v1067 = vld [vmem:[%s3 + $0x28] sm:$0xf]
    %v1068 = vld [vmem:[%s3 + $0x2c] sm:$0xf]
    %v1069 = vld [vmem:[%s3 + $0x30] sm:$0xf]
    %v1070 = vld [vmem:[%s3 + $0x34] sm:$0xf]
    %v1071 = vld [vmem:[%s3 + $0x38] sm:$0xf]
    %v1072 = vld [vmem:[%s3 + $0x3c] sm:$0xf]
    %v1073 = vld [vmem:[%s3 + $0x40] sm:$0xf]
    %v1074 = vld [vmem:[%s3 + $0x44] sm:$0xf]
    %v1075 = vld [vmem:[%s3 + $0x48] sm:$0xf]
    %v1076 = vld [vmem:[%s3 + $0x4c] sm:$0xf]
    %v1077 = vld [vmem:[%s3 + $0x50] sm:$0xf]
    %v1078 = vld [vmem:[%s3 + $0x54] sm:$0xf]
    %v1079 = vld [vmem:[%s3 + $0x58] sm:$0xf]
    %v1080 = vld [vmem:[%s3 + $0x5c] sm:$0xf]
    %v1081 = vld [vmem:[%s3 + $0x60] sm:$0xf]
    %v1082 = vld [vmem:[%s3 + $0x64] sm:$0xf]
    %v1083 = vld [vmem:[%s3 + $0x68] sm:$0xf]
    %v1084 = vld [vmem:[%s3 + $0x6c] sm:$0xf]
    %v1085 = vld [vmem:[%s3 + $0x70] sm:$0xf]
    %v1086 = vld [vmem:[%s3 + $0x74] sm:$0xf]
    %v1087 = vld [vmem:[%s3 + $0x78] sm:$0xf]
    %v1088 = vld [vmem:[%s3 + $0x7c] sm:$0xf]
    %v1089 = vld [vmem:[%s4] sm:$0x1]
    %v1091 = vperm.slane %v1089, 0
    %v1094 = vunpack.c.l.b16 %v1055
    %v1095 = vunpack.c.h.b16 %v1055
    %v1096 = vpack.c.b16 %v1094, %v1094
    %v1097 = vpack.c.b16 %v1095, %v1095
    %v1132 = vunpack.c.l.b16 %v1057
    %v1133 = vunpack.c.l.b16 %v1058
    %v1134 = vunpack.c.l.b16 %v1059
    %v1135 = vunpack.c.l.b16 %v1060
    %v1136 = vunpack.c.l.b16 %v1061
    %v1137 = vunpack.c.l.b16 %v1062
    %v1138 = vunpack.c.l.b16 %v1063
    %v1139 = vunpack.c.l.b16 %v1064
    %v1140 = vunpack.c.l.b16 %v1065
    %v1141 = vunpack.c.l.b16 %v1066
    %v1142 = vunpack.c.l.b16 %v1067
    %v1143 = vunpack.c.l.b16 %v1068
    %v1144 = vunpack.c.l.b16 %v1069
    %v1145 = vunpack.c.l.b16 %v1070
    %v1146 = vunpack.c.l.b16 %v1071
    %v1147 = vunpack.c.l.b16 %v1072
    %v1148 = vunpack.c.l.b16 %v1073
    %v1149 = vunpack.c.l.b16 %v1074
    %v1150 = vunpack.c.l.b16 %v1075
    %v1151 = vunpack.c.l.b16 %v1076
    %v1152 = vunpack.c.l.b16 %v1077
    %v1153 = vunpack.c.l.b16 %v1078
    %v1154 = vunpack.c.l.b16 %v1079
    %v1155 = vunpack.c.l.b16 %v1080
    %v1156 = vunpack.c.l.b16 %v1081
    %v1157 = vunpack.c.l.b16 %v1082
    %v1158 = vunpack.c.l.b16 %v1083
    %v1159 = vunpack.c.l.b16 %v1084
    %v1160 = vunpack.c.l.b16 %v1085
    %v1161 = vunpack.c.l.b16 %v1086
    %v1162 = vunpack.c.l.b16 %v1087
    %v1163 = vunpack.c.l.b16 %v1088
    %v1164 = vpack.c.b16 %v1133, %v1132
    %v1165 = vpack.c.b16 %v1135, %v1134
    %v1166 = vpack.c.b16 %v1137, %v1136
    %v1167 = vpack.c.b16 %v1139, %v1138
    %v1168 = vpack.c.b16 %v1141, %v1140
    %v1169 = vpack.c.b16 %v1143, %v1142
    %v1170 = vpack.c.b16 %v1145, %v1144
    %v1171 = vpack.c.b16 %v1147, %v1146
    %v1172 = vpack.c.b16 %v1149, %v1148
    %v1173 = vpack.c.b16 %v1151, %v1150
    %v1174 = vpack.c.b16 %v1153, %v1152
    %v1175 = vpack.c.b16 %v1155, %v1154
    %v1176 = vpack.c.b16 %v1157, %v1156
    %v1177 = vpack.c.b16 %v1159, %v1158
    %v1178 = vpack.c.b16 %v1161, %v1160
    %v1179 = vpack.c.b16 %v1163, %v1162
    %1196 = vmatpush.bf16.msra.mxu0 %v1171
    %1197 = vmatpush.bf16.msra.mxu0 %v1170
    %1198 = vmatpush.bf16.msra.mxu0 %v1169
    %1199 = vmatpush.bf16.msra.mxu0 %v1168
    %1200 = vmatpush.bf16.msra.mxu0 %v1167
    %1201 = vmatpush.bf16.msra.mxu0 %v1166
    %1202 = vmatpush.bf16.msra.mxu0 %v1165
    %1203 = vmatpush.bf16.msra.mxu0 %v1164
    %1204 = vmatmul.bf16.gmra.mxu0 %v1096
    %v1205 = vpop.f32.mrf.mxu0
    %v1206 = vadd.f32 %v1091, %v1205
    %v1207 = vpop.f32.mrf.mxu0
    %1208 = vdwg.mxu0
    %1209 = vmatpush.bf16.msra.mxu0 %v1179
    %1210 = vmatpush.bf16.msra.mxu0 %v1178
    %1211 = vmatpush.bf16.msra.mxu0 %v1177
    %1212 = vmatpush.bf16.msra.mxu0 %v1176
    %1213 = vmatpush.bf16.msra.mxu0 %v1175
    %1214 = vmatpush.bf16.msra.mxu0 %v1174
    %1215 = vmatpush.bf16.msra.mxu0 %v1173
    %1216 = vmatpush.bf16.msra.mxu0 %v1172
    %1217 = vmatmul.bf16.gmra.mxu0 %v1097
    %v1218 = vpop.f32.mrf.mxu0
    %v1219 = vadd.f32 %v1206, %v1218
    %v1220 = vpop.f32.mrf.mxu0
    %1221 = vdwg.mxu0
    %1222 = vst [vmem:[%s6] sm:$0xff] %v1219
    // Predicated region
    $region22: #{image_encoder_forward.5} parent=1 // pred_check
      _
    $region23: #{image_encoder_forward.5} parent=1 // pred_check_branch
      %1224 = sbr.rel (0) target = $region25
    $region24: #{image_encoder_forward.5} parent=1 // pred_region
      %1226 = vsyncadd [#allocation3], 0
      %s1228 = sshll.u32 [#allocation2], 4
      %s1229 = int_to_ptr.vmem [resolvable:$true] %s1228
      %s1230 = sshll.u32 %s5, 4
      %s1231 = int_to_ptr.hbm [resolvable:$true] %s1230
      %1233 = dma.vmem_to_hbm [thread:$0]  %s1229, 128, %s1231, [#allocation3]
    $region25: #{image_encoder_forward.5} parent=1 // pred_fallthru
      _
    // Predicated region
    $region26: #{image_encoder_forward.5} parent=1 // pred_check
      _
    $region27: #{image_encoder_forward.5} parent=1 // pred_check_branch
      %1235 = sbr.rel (0) target = $region29
    $region28: #{image_encoder_forward.5} parent=1 // pred_region
      _
    $region29: #{image_encoder_forward.5} parent=1 // pred_fallthru
      _
    // Predicated region
    $region30: #{image_encoder_forward.5} parent=1 // pred_check
      _
    $region31: #{image_encoder_forward.5} parent=1 // pred_check_branch
      %1237 = sbr.rel (0) target = $region33
    $region32: #{image_encoder_forward.5} parent=1 // pred_region
      %1239 = dma.done [#allocation3], 128
    $region33: #{image_encoder_forward.5} parent=1 // pred_fallthru
      _
    // Predicated region
    $region34: #{image_encoder_forward.5} parent=1 // pred_check
      _
    $region35: #{image_encoder_forward.5} parent=1 // pred_check_branch
      %1241 = sbr.rel (0) target = $region37
    $region36: #{image_encoder_forward.5} parent=1 // pred_region
      _
    $region37: #{image_encoder_forward.5} parent=1 // pred_fallthru
      _
    %1242 = vsyncpa [#allocation3], 1

</llo_original>
